<compile_context>
chip_gen: v6e
topology: v6e:2x2x1
jax: 0.10.0
libtpu: 0.0.40
codegen_flags: <defaults>
</compile_context>

<pallas_src>
import jax
import jax.numpy as jnp
from jax.experimental import pallas as pl
from jax.experimental.pallas import tpu as pltpu


def _fused_kernel(x_ref, w_ref, p1_ref, p2_ref, o_ref):
    # BN1 (folded) + ReLU in f32 on the VPU (v5e has no bf16 VPU -> keep f32).
    # x: (Cin, P); p1: (Cin, 2) = [scale1 | shift1], broadcast along lanes.
    p1 = p1_ref[...]
    s1 = p1[:, 0:1]
    b1 = p1[:, 1:2]
    h = jnp.maximum(x_ref[...] * s1 + b1, 0.0)                      # (Cin, P) f32

    # 1x1 conv == channel matmul on the MXU: bf16 operands, f32 accumulation.
    y = jnp.dot(w_ref[...], h.astype(jnp.bfloat16),
                preferred_element_type=jnp.float32)                 # (Cout, P) f32

    # BN2 (folded) + ReLU. p2: (Cout, 2) = [scale2 | shift2].
    p2 = p2_ref[...]
    s2 = p2[:, 0:1]
    b2 = p2[:, 1:2]
    o_ref[...] = jnp.maximum(y * s2 + b2, 0.0)


def fold_params(w_oihw, gamma1, beta1, mean1, var1,
                gamma2, beta2, mean2, var2, eps=1e-5):
    """One-time init: fold BN params and pre-cast the conv weight.

    Call this ONCE (outside the per-step hot path) and reuse the results.
    """
    Cout, Cin = w_oihw.shape[0], w_oihw.shape[1]
    scale1 = gamma1 * jax.lax.rsqrt(var1 + eps)
    shift1 = beta1 - mean1 * scale1
    scale2 = gamma2 * jax.lax.rsqrt(var2 + eps)
    shift2 = beta2 - mean2 * scale2
    # Raw conv weight (Cout, Cin, 1, 1) -> (Cout, Cin) bf16 (cast once here).
    # BN2's multiplicative part is applied in f32 inside the kernel, so the bf16
    # quantization error is NOT scaled per output channel.
    w2d = w_oihw.reshape(Cout, Cin).astype(jnp.bfloat16)
    p1 = jnp.stack([scale1, shift1], axis=1).astype(jnp.float32)    # (Cin, 2)
    p2 = jnp.stack([scale2, shift2], axis=1).astype(jnp.float32)    # (Cout, 2)
    return w2d, p1, p2


@jax.jit
def fused_forward(x_nchw, w2d, p1, p2):
    N, Cin, H, W = x_nchw.shape
    Cout = w2d.shape[0]
    P = N * H * W

    # NCHW -> (Cin, P). For N == 1 this is a pure reshape/bitcast (no transpose
    # kernel launch); for N > 1 it becomes a real transpose.
    # TODO(synk): for N > 1 / large P, add grid=(pl.cdiv(P, TILE_P),) over the
    # lane axis with a resident weight block (index_map returning the same block)
    # and dimension_semantics=("parallel",) so v7x's two TensorCores split it;
    # re-derive TILE_P against v7x's 64 MiB VMEM.
    # TODO(synk): if the upstream producer already emits bf16 activations, accept
    # x in bf16 and widen in-kernel (halves the dominant x DMA on v5e).
    x2d = jnp.transpose(x_nchw, (1, 0, 2, 3)).reshape(Cin, P)

    cost = pl.CostEstimate(
        flops=2 * P * Cin * Cout,
        transcendentals=0,
        bytes_accessed=(Cin * P * 4 + Cout * Cin * 2
                        + Cin * 2 * 4 + Cout * 2 * 4 + Cout * P * 4),
    )

    # Problem is tiny (P = 49): everything fits in VMEM, single program, no grid.
    out2d = pl.pallas_call(
        _fused_kernel,
        out_shape=jax.ShapeDtypeStruct((Cout, P), jnp.float32),
        in_specs=[
            pl.BlockSpec(memory_space=pltpu.MemorySpace.VMEM),  # x  (Cin, P)    f32
            pl.BlockSpec(memory_space=pltpu.MemorySpace.VMEM),  # w  (Cout, Cin) bf16
            pl.BlockSpec(memory_space=pltpu.MemorySpace.VMEM),  # p1 (Cin, 2)    f32
            pl.BlockSpec(memory_space=pltpu.MemorySpace.VMEM),  # p2 (Cout, 2)   f32
        ],
        out_specs=pl.BlockSpec(memory_space=pltpu.MemorySpace.VMEM),
        compiler_params=pltpu.CompilerParams(vmem_limit_bytes=16 * 1024 * 1024),
        cost_estimate=cost,
    )(x2d, w2d, p1, p2)

    # (Cout, P) -> NCHW (free for N == 1: size-1 axis move + reshape).
    return jnp.transpose(out2d.reshape(Cout, N, H, W), (1, 0, 2, 3))


def _reference(x_nchw, w_oihw, g1, b1, m1, v1, g2, b2, m2, v2, eps=1e-5):
    # Pure-JAX f32 reference (inference-mode BatchNorm semantics).
    def bn(x, g, b, m, v):
        return (x - m[None, :, None, None]) / jnp.sqrt(v[None, :, None, None] + eps) \
               * g[None, :, None, None] + b[None, :, None, None]
    h = jnp.maximum(bn(x_nchw, g1, b1, m1, v1), 0.0)
    y = jax.lax.conv_general_dilated(h, w_oihw, window_strides=(1, 1), padding="VALID",
                                     dimension_numbers=("NCHW", "OIHW", "NCHW"))
    return jnp.maximum(bn(y, g2, b2, m2, v2), 0.0)


if __name__ == "__main__":
    Cin, Cout, N, H, W = 1248, 128, 1, 7, 7

    key = jax.random.PRNGKey(0)
    ks = jax.random.split(key, 10)
    x = jax.random.normal(ks[0], (N, Cin, H, W), jnp.float32)
    w = jax.random.normal(ks[1], (Cout, Cin, 1, 1), jnp.float32) * 0.02

    gamma1 = jax.random.normal(ks[2], (Cin,), jnp.float32) * 0.1 + 1.0
    beta1 = jax.random.normal(ks[3], (Cin,), jnp.float32) * 0.1
    mean1 = jax.random.normal(ks[4], (Cin,), jnp.float32) * 0.1
    var1 = jax.random.uniform(ks[5], (Cin,), jnp.float32, 0.5, 1.5)

    gamma2 = jax.random.normal(ks[6], (Cout,), jnp.float32) * 0.1 + 1.0
    beta2 = jax.random.normal(ks[7], (Cout,), jnp.float32) * 0.1
    mean2 = jax.random.normal(ks[8], (Cout,), jnp.float32) * 0.1
    var2 = jax.random.uniform(ks[9], (Cout,), jnp.float32, 0.5, 1.5)

    # One-time parameter folding (outside the hot path).
    w2d, p1, p2 = fold_params(w, gamma1, beta1, mean1, var1,
                              gamma2, beta2, mean2, var2)
    w2d, p1, p2 = jax.block_until_ready((w2d, p1, p2))

    out = fused_forward(x, w2d, p1, p2)
    out = jax.block_until_ready(out)

    ref = _reference(x, w, gamma1, beta1, mean1, var1, gamma2, beta2, mean2, var2)
    assert out.shape == (N, Cout, H, W), out.shape
    # Tolerance accounts for bf16 MXU operands (weight + activations) vs. f32 ref.
    assert jnp.allclose(out, ref, atol=2e-2, rtol=2e-2), \
        float(jnp.max(jnp.abs(out - ref)))

    print("KERNEL_OK")
</pallas_src>

<mosaic_0001>
module attributes {stable_mosaic.version = 11 : i64} {
  func.func @_fused_kernel(%arg0: memref<1248x49xf32, #tpu.memory_space<vmem>>, %arg1: memref<128x1248xbf16, #tpu.memory_space<vmem>>, %arg2: memref<1248x2xf32, #tpu.memory_space<vmem>>, %arg3: memref<128x2xf32, #tpu.memory_space<vmem>>, %arg4: memref<128x49xf32, #tpu.memory_space<vmem>>) attributes {dimension_semantics = [], scalar_prefetch = 0 : i64, scratch_operands = 0 : i64, tpu.core_type = #tpu.core_type<tc>} {
    %c0 = arith.constant 0 : index
    %c0_0 = arith.constant 0 : index
    %0 = vector.load %arg2[%c0, %c0_0] : memref<1248x2xf32, #tpu.memory_space<vmem>>, vector<1248x2xf32>
    %1 = vector.extract_strided_slice %0 {offsets = [0, 0], sizes = [1248, 1], strides = [1, 1]} : vector<1248x2xf32> to vector<1248x1xf32>
    %2 = vector.extract_strided_slice %0 {offsets = [0, 1], sizes = [1248, 1], strides = [1, 1]} : vector<1248x2xf32> to vector<1248x1xf32>
    %c0_1 = arith.constant 0 : index
    %c0_2 = arith.constant 0 : index
    %3 = vector.load %arg0[%c0_1, %c0_2] : memref<1248x49xf32, #tpu.memory_space<vmem>>, vector<1248x49xf32>
    %4 = vector.broadcast %1 : vector<1248x1xf32> to vector<1248x49xf32>
    %5 = arith.mulf %3, %4 : vector<1248x49xf32>
    %6 = vector.broadcast %2 : vector<1248x1xf32> to vector<1248x49xf32>
    %7 = arith.addf %5, %6 : vector<1248x49xf32>
    %cst = arith.constant 0.000000e+00 : f32
    %8 = vector.broadcast %cst : f32 to vector<1248x49xf32>
    %9 = arith.maximumf %7, %8 : vector<1248x49xf32>
    %c0_3 = arith.constant 0 : index
    %c0_4 = arith.constant 0 : index
    %10 = vector.load %arg1[%c0_3, %c0_4] : memref<128x1248xbf16, #tpu.memory_space<vmem>>, vector<128x1248xbf16>
    %11 = arith.truncf %9 : vector<1248x49xf32> to vector<1248x49xbf16>
    %cst_5 = arith.constant dense<0.000000e+00> : vector<128x49xf32>
    %12 = tpu.matmul %10, %11, %cst_5 {dimension_numbers = #tpu.dot_dimension_numbers<[1], [0], [0], [1], [0, 0, 1, 1], [], []>} : vector<128x1248xbf16>, vector<1248x49xbf16>, vector<128x49xf32> -> vector<128x49xf32>
    %c0_6 = arith.constant 0 : index
    %c0_7 = arith.constant 0 : index
    %13 = vector.load %arg3[%c0_6, %c0_7] : memref<128x2xf32, #tpu.memory_space<vmem>>, vector<128x2xf32>
    %14 = vector.extract_strided_slice %13 {offsets = [0, 0], sizes = [128, 1], strides = [1, 1]} : vector<128x2xf32> to vector<128x1xf32>
    %15 = vector.extract_strided_slice %13 {offsets = [0, 1], sizes = [128, 1], strides = [1, 1]} : vector<128x2xf32> to vector<128x1xf32>
    %16 = vector.broadcast %14 : vector<128x1xf32> to vector<128x49xf32>
    %17 = arith.mulf %12, %16 : vector<128x49xf32>
    %18 = vector.broadcast %15 : vector<128x1xf32> to vector<128x49xf32>
    %19 = arith.addf %17, %18 : vector<128x49xf32>
    %cst_8 = arith.constant 0.000000e+00 : f32
    %20 = vector.broadcast %cst_8 : f32 to vector<128x49xf32>
    %21 = arith.maximumf %19, %20 : vector<128x49xf32>
    %c0_9 = arith.constant 0 : index
    %c0_10 = arith.constant 0 : index
    %22 = vector.load %arg4[%c0_9, %c0_10] : memref<128x49xf32, #tpu.memory_space<vmem>>, vector<128x49xf32>
    tpu.vector_store %arg4[%c0_9, %c0_10], %21 {strides = array<i32>} : memref<128x49xf32, #tpu.memory_space<vmem>>, vector<128x49xf32>,
    return
  }
}

</mosaic_0001>

<llo_original>
// kernel: fused_forward.1
$region0: #{fused_forward.1}
  #allocation0 [shape = 'u32[]', space=smem, size = 0x4, offset = 0x4, fixed_abs, tag = 'smem constant byte address 0x4 - core index']
  #allocation1 [shape = 'u32[144,128]{1,0:T(1,128)}', space=vmem, size = 0x12000, scoped, tag = 'internal scratch']
  %s0 = inlined_call_operand.vmem [shape: f32[1248,49], index: 0, kind: input, shape index: {}]
  %s1 = inlined_call_operand.vmem [shape: bf16[128,1248], index: 1, kind: input, shape index: {}]
  %s2 = inlined_call_operand.vmem [shape: f32[1248,2], index: 2, kind: input, shape index: {}]
  %s3 = inlined_call_operand.vmem [shape: f32[128,2], index: 3, kind: input, shape index: {}]
  %s4 = inlined_call_operand.vmem [shape: f32[128,49], index: 4, kind: output, shape index: {}]
  %s5 = sld [smem:[#allocation0]]
  $region26: #{fused_forward.1} parent=0
    _
  %s7 = ssub.s32 1, %s5
  %s8 = scalar_select 0, %s7, %s5
  // Predicated region
  $region2: #{fused_forward.1} parent=0 // pred_check
    _
  $region3: #{fused_forward.1} parent=0 // pred_check_branch
    %10 = sbr.rel (0) target = $region5
  $region4: #{fused_forward.1} parent=0 // pred_region
    _
  $region5: #{fused_forward.1} parent=0 // pred_fallthru
    _
  // Predicated region
  $region6: #{fused_forward.1} parent=0 // pred_check
    _
  $region7: #{fused_forward.1} parent=0 // pred_check_branch
    %12 = sbr.rel (0) target = $region9
  $region8: #{fused_forward.1} parent=0 // pred_region
    _
  $region9: #{fused_forward.1} parent=0 // pred_fallthru
    _
  // Predicated region
  $region10: #{fused_forward.1} parent=0 // pred_check
    _
  $region11: #{fused_forward.1} parent=0 // pred_check_branch
    %14 = sbr.rel (0) target = $region13
  $region12: #{fused_forward.1} parent=0 // pred_region
    _
  $region13: #{fused_forward.1} parent=0 // pred_fallthru
    _
  // Predicated region
  $region14: #{fused_forward.1} parent=0 // pred_check
    _
  $region15: #{fused_forward.1} parent=0 // pred_check_branch
    %16 = sbr.rel (0) target = $region17
  $region16: #{fused_forward.1} parent=0 // pred_region
    _
  $region17: #{fused_forward.1} parent=0 // pred_fallthru
    _
  %v18 = vld [vmem:[%s2] sm:$0xff]
  %v19 = vld [vmem:[%s2 + $0x8] sm:$0xff]
  %v20 = vld [vmem:[%s2 + $0x10] sm:$0xff]
  %v21 = vld [vmem:[%s2 + $0x18] sm:$0xff]
  %v22 = vld [vmem:[%s2 + $0x20] sm:$0xff]
  %v23 = vld [vmem:[%s2 + $0x28] sm:$0xff]
  %v24 = vld [vmem:[%s2 + $0x30] sm:$0xff]
  %v25 = vld [vmem:[%s2 + $0x38] sm:$0xff]
  %v26 = vld [vmem:[%s2 + $0x40] sm:$0xff]
  %v27 = vld [vmem:[%s2 + $0x48] sm:$0xff]
  %v28 = vld [vmem:[%s2 + $0x50] sm:$0xff]
  %v29 = vld [vmem:[%s2 + $0x58] sm:$0xff]
  %v30 = vld [vmem:[%s2 + $0x60] sm:$0xff]
  %v31 = vld [vmem:[%s2 + $0x68] sm:$0xff]
  %v32 = vld [vmem:[%s2 + $0x70] sm:$0xff]
  %v33 = vld [vmem:[%s2 + $0x78] sm:$0xff]
  %v34 = vld [vmem:[%s2 + $0x80] sm:$0xff]
  %v35 = vld [vmem:[%s2 + $0x88] sm:$0xff]
  %v36 = vld [vmem:[%s2 + $0x90] sm:$0xff]
  %v37 = vld [vmem:[%s2 + $0x98] sm:$0xff]
  %v38 = vld [vmem:[%s2 + $0xa0] sm:$0xff]
  %v39 = vld [vmem:[%s2 + $0xa8] sm:$0xff]
  %v40 = vld [vmem:[%s2 + $0xb0] sm:$0xff]
  %v41 = vld [vmem:[%s2 + $0xb8] sm:$0xff]
  %v42 = vld [vmem:[%s2 + $0xc0] sm:$0xff]
  %v43 = vld [vmem:[%s2 + $0xc8] sm:$0xff]
  %v44 = vld [vmem:[%s2 + $0xd0] sm:$0xff]
  %v45 = vld [vmem:[%s2 + $0xd8] sm:$0xff]
  %v46 = vld [vmem:[%s2 + $0xe0] sm:$0xff]
  %v47 = vld [vmem:[%s2 + $0xe8] sm:$0xff]
  %v48 = vld [vmem:[%s2 + $0xf0] sm:$0xff]
  %v49 = vld [vmem:[%s2 + $0xf8] sm:$0xff]
  %v50 = vld [vmem:[%s2 + $0x100] sm:$0xff]
  %v51 = vld [vmem:[%s2 + $0x108] sm:$0xff]
  %v52 = vld [vmem:[%s2 + $0x110] sm:$0xff]
  %v53 = vld [vmem:[%s2 + $0x118] sm:$0xff]
  %v54 = vld [vmem:[%s2 + $0x120] sm:$0xff]
  %v55 = vld [vmem:[%s2 + $0x128] sm:$0xff]
  %v56 = vld [vmem:[%s2 + $0x130] sm:$0xff]
  %v57 = vld [vmem:[%s2 + $0x138] sm:$0xff]
  %v58 = vld [vmem:[%s2 + $0x140] sm:$0xff]
  %v59 = vld [vmem:[%s2 + $0x148] sm:$0xff]
  %v60 = vld [vmem:[%s2 + $0x150] sm:$0xff]
  %v61 = vld [vmem:[%s2 + $0x158] sm:$0xff]
  %v62 = vld [vmem:[%s2 + $0x160] sm:$0xff]
  %v63 = vld [vmem:[%s2 + $0x168] sm:$0xff]
  %v64 = vld [vmem:[%s2 + $0x170] sm:$0xff]
  %v65 = vld [vmem:[%s2 + $0x178] sm:$0xff]
  %v66 = vld [vmem:[%s2 + $0x180] sm:$0xff]
  %v67 = vld [vmem:[%s2 + $0x188] sm:$0xff]
  %v68 = vld [vmem:[%s2 + $0x190] sm:$0xff]
  %v69 = vld [vmem:[%s2 + $0x198] sm:$0xff]
  %v70 = vld [vmem:[%s2 + $0x1a0] sm:$0xff]
  %v71 = vld [vmem:[%s2 + $0x1a8] sm:$0xff]
  %v72 = vld [vmem:[%s2 + $0x1b0] sm:$0xff]
  %v73 = vld [vmem:[%s2 + $0x1b8] sm:$0xff]
  %v74 = vld [vmem:[%s2 + $0x1c0] sm:$0xff]
  %v75 = vld [vmem:[%s2 + $0x1c8] sm:$0xff]
  %v76 = vld [vmem:[%s2 + $0x1d0] sm:$0xff]
  %v77 = vld [vmem:[%s2 + $0x1d8] sm:$0xff]
  %v78 = vld [vmem:[%s2 + $0x1e0] sm:$0xff]
  %v79 = vld [vmem:[%s2 + $0x1e8] sm:$0xff]
  %v80 = vld [vmem:[%s2 + $0x1f0] sm:$0xff]
  %v81 = vld [vmem:[%s2 + $0x1f8] sm:$0xff]
  %v82 = vld [vmem:[%s2 + $0x200] sm:$0xff]
  %v83 = vld [vmem:[%s2 + $0x208] sm:$0xff]
  %v84 = vld [vmem:[%s2 + $0x210] sm:$0xff]
  %v85 = vld [vmem:[%s2 + $0x218] sm:$0xff]
  %v86 = vld [vmem:[%s2 + $0x220] sm:$0xff]
  %v87 = vld [vmem:[%s2 + $0x228] sm:$0xff]
  %v88 = vld [vmem:[%s2 + $0x230] sm:$0xff]
  %v89 = vld [vmem:[%s2 + $0x238] sm:$0xff]
  %v90 = vld [vmem:[%s2 + $0x240] sm:$0xff]
  %v91 = vld [vmem:[%s2 + $0x248] sm:$0xff]
  %v92 = vld [vmem:[%s2 + $0x250] sm:$0xff]
  %v93 = vld [vmem:[%s2 + $0x258] sm:$0xff]
  %v94 = vld [vmem:[%s2 + $0x260] sm:$0xff]
  %v95 = vld [vmem:[%s2 + $0x268] sm:$0xff]
  %v96 = vld [vmem:[%s2 + $0x270] sm:$0xff]
  %v97 = vld [vmem:[%s2 + $0x278] sm:$0xff]
  %v98 = vld [vmem:[%s2 + $0x280] sm:$0xff]
  %v99 = vld [vmem:[%s2 + $0x288] sm:$0xff]
  %v100 = vld [vmem:[%s2 + $0x290] sm:$0xff]
  %v101 = vld [vmem:[%s2 + $0x298] sm:$0xff]
  %v102 = vld [vmem:[%s2 + $0x2a0] sm:$0xff]
  %v103 = vld [vmem:[%s2 + $0x2a8] sm:$0xff]
  %v104 = vld [vmem:[%s2 + $0x2b0] sm:$0xff]
  %v105 = vld [vmem:[%s2 + $0x2b8] sm:$0xff]
  %v106 = vld [vmem:[%s2 + $0x2c0] sm:$0xff]
  %v107 = vld [vmem:[%s2 + $0x2c8] sm:$0xff]
  %v108 = vld [vmem:[%s2 + $0x2d0] sm:$0xff]
  %v109 = vld [vmem:[%s2 + $0x2d8] sm:$0xff]
  %v110 = vld [vmem:[%s2 + $0x2e0] sm:$0xff]
  %v111 = vld [vmem:[%s2 + $0x2e8] sm:$0xff]
  %v112 = vld [vmem:[%s2 + $0x2f0] sm:$0xff]
  %v113 = vld [vmem:[%s2 + $0x2f8] sm:$0xff]
  %v114 = vld [vmem:[%s2 + $0x300] sm:$0xff]
  %v115 = vld [vmem:[%s2 + $0x308] sm:$0xff]
  %v116 = vld [vmem:[%s2 + $0x310] sm:$0xff]
  %v117 = vld [vmem:[%s2 + $0x318] sm:$0xff]
  %v118 = vld [vmem:[%s2 + $0x320] sm:$0xff]
  %v119 = vld [vmem:[%s2 + $0x328] sm:$0xff]
  %v120 = vld [vmem:[%s2 + $0x330] sm:$0xff]
  %v121 = vld [vmem:[%s2 + $0x338] sm:$0xff]
  %v122 = vld [vmem:[%s2 + $0x340] sm:$0xff]
  %v123 = vld [vmem:[%s2 + $0x348] sm:$0xff]
  %v124 = vld [vmem:[%s2 + $0x350] sm:$0xff]
  %v125 = vld [vmem:[%s2 + $0x358] sm:$0xff]
  %v126 = vld [vmem:[%s2 + $0x360] sm:$0xff]
  %v127 = vld [vmem:[%s2 + $0x368] sm:$0xff]
  %v128 = vld [vmem:[%s2 + $0x370] sm:$0xff]
  %v129 = vld [vmem:[%s2 + $0x378] sm:$0xff]
  %v130 = vld [vmem:[%s2 + $0x380] sm:$0xff]
  %v131 = vld [vmem:[%s2 + $0x388] sm:$0xff]
  %v132 = vld [vmem:[%s2 + $0x390] sm:$0xff]
  %v133 = vld [vmem:[%s2 + $0x398] sm:$0xff]
  %v134 = vld [vmem:[%s2 + $0x3a0] sm:$0xff]
  %v135 = vld [vmem:[%s2 + $0x3a8] sm:$0xff]
  %v136 = vld [vmem:[%s2 + $0x3b0] sm:$0xff]
  %v137 = vld [vmem:[%s2 + $0x3b8] sm:$0xff]
  %v138 = vld [vmem:[%s2 + $0x3c0] sm:$0xff]
  %v139 = vld [vmem:[%s2 + $0x3c8] sm:$0xff]
  %v140 = vld [vmem:[%s2 + $0x3d0] sm:$0xff]
  %v141 = vld [vmem:[%s2 + $0x3d8] sm:$0xff]
  %v142 = vld [vmem:[%s2 + $0x3e0] sm:$0xff]
  %v143 = vld [vmem:[%s2 + $0x3e8] sm:$0xff]
  %v144 = vld [vmem:[%s2 + $0x3f0] sm:$0xff]
  %v145 = vld [vmem:[%s2 + $0x3f8] sm:$0xff]
  %v146 = vld [vmem:[%s2 + $0x400] sm:$0xff]
  %v147 = vld [vmem:[%s2 + $0x408] sm:$0xff]
  %v148 = vld [vmem:[%s2 + $0x410] sm:$0xff]
  %v149 = vld [vmem:[%s2 + $0x418] sm:$0xff]
  %v150 = vld [vmem:[%s2 + $0x420] sm:$0xff]
  %v151 = vld [vmem:[%s2 + $0x428] sm:$0xff]
  %v152 = vld [vmem:[%s2 + $0x430] sm:$0xff]
  %v153 = vld [vmem:[%s2 + $0x438] sm:$0xff]
  %v154 = vld [vmem:[%s2 + $0x440] sm:$0xff]
  %v155 = vld [vmem:[%s2 + $0x448] sm:$0xff]
  %v156 = vld [vmem:[%s2 + $0x450] sm:$0xff]
  %v157 = vld [vmem:[%s2 + $0x458] sm:$0xff]
  %v158 = vld [vmem:[%s2 + $0x460] sm:$0xff]
  %v159 = vld [vmem:[%s2 + $0x468] sm:$0xff]
  %v160 = vld [vmem:[%s2 + $0x470] sm:$0xff]
  %v161 = vld [vmem:[%s2 + $0x478] sm:$0xff]
  %v162 = vld [vmem:[%s2 + $0x480] sm:$0xff]
  %v163 = vld [vmem:[%s2 + $0x488] sm:$0xff]
  %v164 = vld [vmem:[%s2 + $0x490] sm:$0xff]
  %v165 = vld [vmem:[%s2 + $0x498] sm:$0xff]
  %v166 = vld [vmem:[%s2 + $0x4a0] sm:$0xff]
  %v167 = vld [vmem:[%s2 + $0x4a8] sm:$0xff]
  %v168 = vld [vmem:[%s2 + $0x4b0] sm:$0xff]
  %v169 = vld [vmem:[%s2 + $0x4b8] sm:$0xff]
  %v170 = vld [vmem:[%s2 + $0x4c0] sm:$0xff]
  %v171 = vld [vmem:[%s2 + $0x4c8] sm:$0xff]
  %v172 = vld [vmem:[%s2 + $0x4d0] sm:$0xff]
  %v173 = vld [vmem:[%s2 + $0x4d8] sm:$0xff]
  %v174 = vld [vmem:[%s0] sm:$0xff]
  %v175 = vld [vmem:[%s0 + $0x8] sm:$0xff]
  %v176 = vld [vmem:[%s0 + $0x10] sm:$0xff]
  %v177 = vld [vmem:[%s0 + $0x18] sm:$0xff]
  %v178 = vld [vmem:[%s0 + $0x20] sm:$0xff]
  %v179 = vld [vmem:[%s0 + $0x28] sm:$0xff]
  %v180 = vld [vmem:[%s0 + $0x30] sm:$0xff]
  %v181 = vld [vmem:[%s0 + $0x38] sm:$0xff]
  %v182 = vld [vmem:[%s0 + $0x40] sm:$0xff]
  %v183 = vld [vmem:[%s0 + $0x48] sm:$0xff]
  %v184 = vld [vmem:[%s0 + $0x50] sm:$0xff]
  %v185 = vld [vmem:[%s0 + $0x58] sm:$0xff]
  %v186 = vld [vmem:[%s0 + $0x60] sm:$0xff]
  %v187 = vld [vmem:[%s0 + $0x68] sm:$0xff]
  %v188 = vld [vmem:[%s0 + $0x70] sm:$0xff]
  %v189 = vld [vmem:[%s0 + $0x78] sm:$0xff]
  %v190 = vld [vmem:[%s0 + $0x80] sm:$0xff]
  %v191 = vld [vmem:[%s0 + $0x88] sm:$0xff]
  %v192 = vld [vmem:[%s0 + $0x90] sm:$0xff]
  %v193 = vld [vmem:[%s0 + $0x98] sm:$0xff]
  %v194 = vld [vmem:[%s0 + $0xa0] sm:$0xff]
  %v195 = vld [vmem:[%s0 + $0xa8] sm:$0xff]
  %v196 = vld [vmem:[%s0 + $0xb0] sm:$0xff]
  %v197 = vld [vmem:[%s0 + $0xb8] sm:$0xff]
  %v198 = vld [vmem:[%s0 + $0xc0] sm:$0xff]
  %v199 = vld [vmem:[%s0 + $0xc8] sm:$0xff]
  %v200 = vld [vmem:[%s0 + $0xd0] sm:$0xff]
  %v201 = vld [vmem:[%s0 + $0xd8] sm:$0xff]
  %v202 = vld [vmem:[%s0 + $0xe0] sm:$0xff]
  %v203 = vld [vmem:[%s0 + $0xe8] sm:$0xff]
  %v204 = vld [vmem:[%s0 + $0xf0] sm:$0xff]
  %v205 = vld [vmem:[%s0 + $0xf8] sm:$0xff]
  %v206 = vld [vmem:[%s0 + $0x100] sm:$0xff]
  %v207 = vld [vmem:[%s0 + $0x108] sm:$0xff]
  %v208 = vld [vmem:[%s0 + $0x110] sm:$0xff]
  %v209 = vld [vmem:[%s0 + $0x118] sm:$0xff]
  %v210 = vld [vmem:[%s0 + $0x120] sm:$0xff]
  %v211 = vld [vmem:[%s0 + $0x128] sm:$0xff]
  %v212 = vld [vmem:[%s0 + $0x130] sm:$0xff]
  %v213 = vld [vmem:[%s0 + $0x138] sm:$0xff]
  %v214 = vld [vmem:[%s0 + $0x140] sm:$0xff]
  %v215 = vld [vmem:[%s0 + $0x148] sm:$0xff]
  %v216 = vld [vmem:[%s0 + $0x150] sm:$0xff]
  %v217 = vld [vmem:[%s0 + $0x158] sm:$0xff]
  %v218 = vld [vmem:[%s0 + $0x160] sm:$0xff]
  %v219 = vld [vmem:[%s0 + $0x168] sm:$0xff]
  %v220 = vld [vmem:[%s0 + $0x170] sm:$0xff]
  %v221 = vld [vmem:[%s0 + $0x178] sm:$0xff]
  %v222 = vld [vmem:[%s0 + $0x180] sm:$0xff]
  %v223 = vld [vmem:[%s0 + $0x188] sm:$0xff]
  %v224 = vld [vmem:[%s0 + $0x190] sm:$0xff]
  %v225 = vld [vmem:[%s0 + $0x198] sm:$0xff]
  %v226 = vld [vmem:[%s0 + $0x1a0] sm:$0xff]
  %v227 = vld [vmem:[%s0 + $0x1a8] sm:$0xff]
  %v228 = vld [vmem:[%s0 + $0x1b0] sm:$0xff]
  %v229 = vld [vmem:[%s0 + $0x1b8] sm:$0xff]
  %v230 = vld [vmem:[%s0 + $0x1c0] sm:$0xff]
  %v231 = vld [vmem:[%s0 + $0x1c8] sm:$0xff]
  %v232 = vld [vmem:[%s0 + $0x1d0] sm:$0xff]
  %v233 = vld [vmem:[%s0 + $0x1d8] sm:$0xff]
  %v234 = vld [vmem:[%s0 + $0x1e0] sm:$0xff]
  %v235 = vld [vmem:[%s0 + $0x1e8] sm:$0xff]
  %v236 = vld [vmem:[%s0 + $0x1f0] sm:$0xff]
  %v237 = vld [vmem:[%s0 + $0x1f8] sm:$0xff]
  %v238 = vld [vmem:[%s0 + $0x200] sm:$0xff]
  %v239 = vld [vmem:[%s0 + $0x208] sm:$0xff]
  %v240 = vld [vmem:[%s0 + $0x210] sm:$0xff]
  %v241 = vld [vmem:[%s0 + $0x218] sm:$0xff]
  %v242 = vld [vmem:[%s0 + $0x220] sm:$0xff]
  %v243 = vld [vmem:[%s0 + $0x228] sm:$0xff]
  %v244 = vld [vmem:[%s0 + $0x230] sm:$0xff]
  %v245 = vld [vmem:[%s0 + $0x238] sm:$0xff]
  %v246 = vld [vmem:[%s0 + $0x240] sm:$0xff]
  %v247 = vld [vmem:[%s0 + $0x248] sm:$0xff]
  %v248 = vld [vmem:[%s0 + $0x250] sm:$0xff]
  %v249 = vld [vmem:[%s0 + $0x258] sm:$0xff]
  %v250 = vld [vmem:[%s0 + $0x260] sm:$0xff]
  %v251 = vld [vmem:[%s0 + $0x268] sm:$0xff]
  %v252 = vld [vmem:[%s0 + $0x270] sm:$0xff]
  %v253 = vld [vmem:[%s0 + $0x278] sm:$0xff]
  %v254 = vld [vmem:[%s0 + $0x280] sm:$0xff]
  %v255 = vld [vmem:[%s0 + $0x288] sm:$0xff]
  %v256 = vld [vmem:[%s0 + $0x290] sm:$0xff]
  %v257 = vld [vmem:[%s0 + $0x298] sm:$0xff]
  %v258 = vld [vmem:[%s0 + $0x2a0] sm:$0xff]
  %v259 = vld [vmem:[%s0 + $0x2a8] sm:$0xff]
  %v260 = vld [vmem:[%s0 + $0x2b0] sm:$0xff]
  %v261 = vld [vmem:[%s0 + $0x2b8] sm:$0xff]
  %v262 = vld [vmem:[%s0 + $0x2c0] sm:$0xff]
  %v263 = vld [vmem:[%s0 + $0x2c8] sm:$0xff]
  %v264 = vld [vmem:[%s0 + $0x2d0] sm:$0xff]
  %v265 = vld [vmem:[%s0 + $0x2d8] sm:$0xff]
  %v266 = vld [vmem:[%s0 + $0x2e0] sm:$0xff]
  %v267 = vld [vmem:[%s0 + $0x2e8] sm:$0xff]
  %v268 = vld [vmem:[%s0 + $0x2f0] sm:$0xff]
  %v269 = vld [vmem:[%s0 + $0x2f8] sm:$0xff]
  %v270 = vld [vmem:[%s0 + $0x300] sm:$0xff]
  %v271 = vld [vmem:[%s0 + $0x308] sm:$0xff]
  %v272 = vld [vmem:[%s0 + $0x310] sm:$0xff]
  %v273 = vld [vmem:[%s0 + $0x318] sm:$0xff]
  %v274 = vld [vmem:[%s0 + $0x320] sm:$0xff]
  %v275 = vld [vmem:[%s0 + $0x328] sm:$0xff]
  %v276 = vld [vmem:[%s0 + $0x330] sm:$0xff]
  %v277 = vld [vmem:[%s0 + $0x338] sm:$0xff]
  %v278 = vld [vmem:[%s0 + $0x340] sm:$0xff]
  %v279 = vld [vmem:[%s0 + $0x348] sm:$0xff]
  %v280 = vld [vmem:[%s0 + $0x350] sm:$0xff]
  %v281 = vld [vmem:[%s0 + $0x358] sm:$0xff]
  %v282 = vld [vmem:[%s0 + $0x360] sm:$0xff]
  %v283 = vld [vmem:[%s0 + $0x368] sm:$0xff]
  %v284 = vld [vmem:[%s0 + $0x370] sm:$0xff]
  %v285 = vld [vmem:[%s0 + $0x378] sm:$0xff]
  %v286 = vld [vmem:[%s0 + $0x380] sm:$0xff]
  %v287 = vld [vmem:[%s0 + $0x388] sm:$0xff]
  %v288 = vld [vmem:[%s0 + $0x390] sm:$0xff]
  %v289 = vld [vmem:[%s0 + $0x398] sm:$0xff]
  %v290 = vld [vmem:[%s0 + $0x3a0] sm:$0xff]
  %v291 = vld [vmem:[%s0 + $0x3a8] sm:$0xff]
  %v292 = vld [vmem:[%s0 + $0x3b0] sm:$0xff]
  %v293 = vld [vmem:[%s0 + $0x3b8] sm:$0xff]
  %v294 = vld [vmem:[%s0 + $0x3c0] sm:$0xff]
  %v295 = vld [vmem:[%s0 + $0x3c8] sm:$0xff]
  %v296 = vld [vmem:[%s0 + $0x3d0] sm:$0xff]
  %v297 = vld [vmem:[%s0 + $0x3d8] sm:$0xff]
  %v298 = vld [vmem:[%s0 + $0x3e0] sm:$0xff]
  %v299 = vld [vmem:[%s0 + $0x3e8] sm:$0xff]
  %v300 = vld [vmem:[%s0 + $0x3f0] sm:$0xff]
  %v301 = vld [vmem:[%s0 + $0x3f8] sm:$0xff]
  %v302 = vld [vmem:[%s0 + $0x400] sm:$0xff]
  %v303 = vld [vmem:[%s0 + $0x408] sm:$0xff]
  %v304 = vld [vmem:[%s0 + $0x410] sm:$0xff]
  %v305 = vld [vmem:[%s0 + $0x418] sm:$0xff]
  %v306 = vld [vmem:[%s0 + $0x420] sm:$0xff]
  %v307 = vld [vmem:[%s0 + $0x428] sm:$0xff]
  %v308 = vld [vmem:[%s0 + $0x430] sm:$0xff]
  %v309 = vld [vmem:[%s0 + $0x438] sm:$0xff]
  %v310 = vld [vmem:[%s0 + $0x440] sm:$0xff]
  %v311 = vld [vmem:[%s0 + $0x448] sm:$0xff]
  %v312 = vld [vmem:[%s0 + $0x450] sm:$0xff]
  %v313 = vld [vmem:[%s0 + $0x458] sm:$0xff]
  %v314 = vld [vmem:[%s0 + $0x460] sm:$0xff]
  %v315 = vld [vmem:[%s0 + $0x468] sm:$0xff]
  %v316 = vld [vmem:[%s0 + $0x470] sm:$0xff]
  %v317 = vld [vmem:[%s0 + $0x478] sm:$0xff]
  %v318 = vld [vmem:[%s0 + $0x480] sm:$0xff]
  %v319 = vld [vmem:[%s0 + $0x488] sm:$0xff]
  %v320 = vld [vmem:[%s0 + $0x490] sm:$0xff]
  %v321 = vld [vmem:[%s0 + $0x498] sm:$0xff]
  %v322 = vld [vmem:[%s0 + $0x4a0] sm:$0xff]
  %v323 = vld [vmem:[%s0 + $0x4a8] sm:$0xff]
  %v324 = vld [vmem:[%s0 + $0x4b0] sm:$0xff]
  %v325 = vld [vmem:[%s0 + $0x4b8] sm:$0xff]
  %v326 = vld [vmem:[%s0 + $0x4c0] sm:$0xff]
  %v327 = vld [vmem:[%s0 + $0x4c8] sm:$0xff]
  %v328 = vld [vmem:[%s0 + $0x4d0] sm:$0xff]
  %v329 = vld [vmem:[%s0 + $0x4d8] sm:$0xff]
  %331 = vset.pattern.permute.xlu0 0
  %332 = vperm.xlu0 %331, %v18
  %v333 = vpop.permute.xlu0 %332
  %336 = vset.pattern.permute.xlu0 0
  %337 = vperm.xlu0 %336, %v19
  %v338 = vpop.permute.xlu0 %337
  %341 = vset.pattern.permute.xlu0 0
  %342 = vperm.xlu0 %341, %v20
  %v343 = vpop.permute.xlu0 %342
  %346 = vset.pattern.permute.xlu0 0
  %347 = vperm.xlu0 %346, %v21
  %v348 = vpop.permute.xlu0 %347
  %351 = vset.pattern.permute.xlu0 0
  %352 = vperm.xlu0 %351, %v22
  %v353 = vpop.permute.xlu0 %352
  %356 = vset.pattern.permute.xlu0 0
  %357 = vperm.xlu0 %356, %v23
  %v358 = vpop.permute.xlu0 %357
  %361 = vset.pattern.permute.xlu0 0
  %362 = vperm.xlu0 %361, %v24
  %v363 = vpop.permute.xlu0 %362
  %366 = vset.pattern.permute.xlu0 0
  %367 = vperm.xlu0 %366, %v25
  %v368 = vpop.permute.xlu0 %367
  %371 = vset.pattern.permute.xlu0 0
  %372 = vperm.xlu0 %371, %v26
  %v373 = vpop.permute.xlu0 %372
  %376 = vset.pattern.permute.xlu0 0
  %377 = vperm.xlu0 %376, %v27
  %v378 = vpop.permute.xlu0 %377
  %381 = vset.pattern.permute.xlu0 0
  %382 = vperm.xlu0 %381, %v28
  %v383 = vpop.permute.xlu0 %382
  %386 = vset.pattern.permute.xlu0 0
  %387 = vperm.xlu0 %386, %v29
  %v388 = vpop.permute.xlu0 %387
  %391 = vset.pattern.permute.xlu0 0
  %392 = vperm.xlu0 %391, %v30
  %v393 = vpop.permute.xlu0 %392
  %396 = vset.pattern.permute.xlu0 0
  %397 = vperm.xlu0 %396, %v31
  %v398 = vpop.permute.xlu0 %397
  %401 = vset.pattern.permute.xlu0 0
  %402 = vperm.xlu0 %401, %v32
  %v403 = vpop.permute.xlu0 %402
  %406 = vset.pattern.permute.xlu0 0
  %407 = vperm.xlu0 %406, %v33
  %v408 = vpop.permute.xlu0 %407
  %411 = vset.pattern.permute.xlu0 0
  %412 = vperm.xlu0 %411, %v34
  %v413 = vpop.permute.xlu0 %412
  %416 = vset.pattern.permute.xlu0 0
  %417 = vperm.xlu0 %416, %v35
  %v418 = vpop.permute.xlu0 %417
  %421 = vset.pattern.permute.xlu0 0
  %422 = vperm.xlu0 %421, %v36
  %v423 = vpop.permute.xlu0 %422
  %426 = vset.pattern.permute.xlu0 0
  %427 = vperm.xlu0 %426, %v37
  %v428 = vpop.permute.xlu0 %427
  %431 = vset.pattern.permute.xlu0 0
  %432 = vperm.xlu0 %431, %v38
  %v433 = vpop.permute.xlu0 %432
  %436 = vset.pattern.permute.xlu0 0
  %437 = vperm.xlu0 %436, %v39
  %v438 = vpop.permute.xlu0 %437
  %441 = vset.pattern.permute.xlu0 0
  %442 = vperm.xlu0 %441, %v40
  %v443 = vpop.permute.xlu0 %442
  %446 = vset.pattern.permute.xlu0 0
  %447 = vperm.xlu0 %446, %v41
  %v448 = vpop.permute.xlu0 %447
  %451 = vset.pattern.permute.xlu0 0
  %452 = vperm.xlu0 %451, %v42
  %v453 = vpop.permute.xlu0 %452
  %456 = vset.pattern.permute.xlu0 0
  %457 = vperm.xlu0 %456, %v43
  %v458 = vpop.permute.xlu0 %457
  %461 = vset.pattern.permute.xlu0 0
  %462 = vperm.xlu0 %461, %v44
  %v463 = vpop.permute.xlu0 %462
  %466 = vset.pattern.permute.xlu0 0
  %467 = vperm.xlu0 %466, %v45
  %v468 = vpop.permute.xlu0 %467
  %471 = vset.pattern.permute.xlu0 0
  %472 = vperm.xlu0 %471, %v46
  %v473 = vpop.permute.xlu0 %472
  %476 = vset.pattern.permute.xlu0 0
  %477 = vperm.xlu0 %476, %v47
  %v478 = vpop.permute.xlu0 %477
  %481 = vset.pattern.permute.xlu0 0
  %482 = vperm.xlu0 %481, %v48
  %v483 = vpop.permute.xlu0 %482
  %486 = vset.pattern.permute.xlu0 0
  %487 = vperm.xlu0 %486, %v49
  %v488 = vpop.permute.xlu0 %487
  %491 = vset.pattern.permute.xlu0 0
  %492 = vperm.xlu0 %491, %v50
  %v493 = vpop.permute.xlu0 %492
  %496 = vset.pattern.permute.xlu0 0
  %497 = vperm.xlu0 %496, %v51
  %v498 = vpop.permute.xlu0 %497
  %501 = vset.pattern.permute.xlu0 0
  %502 = vperm.xlu0 %501, %v52
  %v503 = vpop.permute.xlu0 %502
  %506 = vset.pattern.permute.xlu0 0
  %507 = vperm.xlu0 %506, %v53
  %v508 = vpop.permute.xlu0 %507
  %511 = vset.pattern.permute.xlu0 0
  %512 = vperm.xlu0 %511, %v54
  %v513 = vpop.permute.xlu0 %512
  %516 = vset.pattern.permute.xlu0 0
  %517 = vperm.xlu0 %516, %v55
  %v518 = vpop.permute.xlu0 %517
  %521 = vset.pattern.permute.xlu0 0
  %522 = vperm.xlu0 %521, %v56
  %v523 = vpop.permute.xlu0 %522
  %526 = vset.pattern.permute.xlu0 0
  %527 = vperm.xlu0 %526, %v57
  %v528 = vpop.permute.xlu0 %527
  %531 = vset.pattern.permute.xlu0 0
  %532 = vperm.xlu0 %531, %v58
  %v533 = vpop.permute.xlu0 %532
  %536 = vset.pattern.permute.xlu0 0
  %537 = vperm.xlu0 %536, %v59
  %v538 = vpop.permute.xlu0 %537
  %541 = vset.pattern.permute.xlu0 0
  %542 = vperm.xlu0 %541, %v60
  %v543 = vpop.permute.xlu0 %542
  %546 = vset.pattern.permute.xlu0 0
  %547 = vperm.xlu0 %546, %v61
  %v548 = vpop.permute.xlu0 %547
  %551 = vset.pattern.permute.xlu0 0
  %552 = vperm.xlu0 %551, %v62
  %v553 = vpop.permute.xlu0 %552
  %556 = vset.pattern.permute.xlu0 0
  %557 = vperm.xlu0 %556, %v63
  %v558 = vpop.permute.xlu0 %557
  %561 = vset.pattern.permute.xlu0 0
  %562 = vperm.xlu0 %561, %v64
  %v563 = vpop.permute.xlu0 %562
  %566 = vset.pattern.permute.xlu0 0
  %567 = vperm.xlu0 %566, %v65
  %v568 = vpop.permute.xlu0 %567
  %571 = vset.pattern.permute.xlu0 0
  %572 = vperm.xlu0 %571, %v66
  %v573 = vpop.permute.xlu0 %572
  %576 = vset.pattern.permute.xlu0 0
  %577 = vperm.xlu0 %576, %v67
  %v578 = vpop.permute.xlu0 %577
  %581 = vset.pattern.permute.xlu0 0
  %582 = vperm.xlu0 %581, %v68
  %v583 = vpop.permute.xlu0 %582
  %586 = vset.pattern.permute.xlu0 0
  %587 = vperm.xlu0 %586, %v69
  %v588 = vpop.permute.xlu0 %587
  %591 = vset.pattern.permute.xlu0 0
  %592 = vperm.xlu0 %591, %v70
  %v593 = vpop.permute.xlu0 %592
  %596 = vset.pattern.permute.xlu0 0
  %597 = vperm.xlu0 %596, %v71
  %v598 = vpop.permute.xlu0 %597
  %601 = vset.pattern.permute.xlu0 0
  %602 = vperm.xlu0 %601, %v72
  %v603 = vpop.permute.xlu0 %602
  %606 = vset.pattern.permute.xlu0 0
  %607 = vperm.xlu0 %606, %v73
  %v608 = vpop.permute.xlu0 %607
  %611 = vset.pattern.permute.xlu0 0
  %612 = vperm.xlu0 %611, %v74
  %v613 = vpop.permute.xlu0 %612
  %616 = vset.pattern.permute.xlu0 0
  %617 = vperm.xlu0 %616, %v75
  %v618 = vpop.permute.xlu0 %617
  %621 = vset.pattern.permute.xlu0 0
  %622 = vperm.xlu0 %621, %v76
  %v623 = vpop.permute.xlu0 %622
  %626 = vset.pattern.permute.xlu0 0
  %627 = vperm.xlu0 %626, %v77
  %v628 = vpop.permute.xlu0 %627
  %631 = vset.pattern.permute.xlu0 0
  %632 = vperm.xlu0 %631, %v78
  %v633 = vpop.permute.xlu0 %632
  %636 = vset.pattern.permute.xlu0 0
  %637 = vperm.xlu0 %636, %v79
  %v638 = vpop.permute.xlu0 %637
  %641 = vset.pattern.permute.xlu0 0
  %642 = vperm.xlu0 %641, %v80
  %v643 = vpop.permute.xlu0 %642
  %646 = vset.pattern.permute.xlu0 0
  %647 = vperm.xlu0 %646, %v81
  %v648 = vpop.permute.xlu0 %647
  %651 = vset.pattern.permute.xlu0 0
  %652 = vperm.xlu0 %651, %v82
  %v653 = vpop.permute.xlu0 %652
  %656 = vset.pattern.permute.xlu0 0
  %657 = vperm.xlu0 %656, %v83
  %v658 = vpop.permute.xlu0 %657
  %661 = vset.pattern.permute.xlu0 0
  %662 = vperm.xlu0 %661, %v84
  %v663 = vpop.permute.xlu0 %662
  %666 = vset.pattern.permute.xlu0 0
  %667 = vperm.xlu0 %666, %v85
  %v668 = vpop.permute.xlu0 %667
  %671 = vset.pattern.permute.xlu0 0
  %672 = vperm.xlu0 %671, %v86
  %v673 = vpop.permute.xlu0 %672
  %676 = vset.pattern.permute.xlu0 0
  %677 = vperm.xlu0 %676, %v87
  %v678 = vpop.permute.xlu0 %677
  %681 = vset.pattern.permute.xlu0 0
  %682 = vperm.xlu0 %681, %v88
  %v683 = vpop.permute.xlu0 %682
  %686 = vset.pattern.permute.xlu0 0
  %687 = vperm.xlu0 %686, %v89
  %v688 = vpop.permute.xlu0 %687
  %691 = vset.pattern.permute.xlu0 0
  %692 = vperm.xlu0 %691, %v90
  %v693 = vpop.permute.xlu0 %692
  %696 = vset.pattern.permute.xlu0 0
  %697 = vperm.xlu0 %696, %v91
  %v698 = vpop.permute.xlu0 %697
  %701 = vset.pattern.permute.xlu0 0
  %702 = vperm.xlu0 %701, %v92
  %v703 = vpop.permute.xlu0 %702
  %706 = vset.pattern.permute.xlu0 0
  %707 = vperm.xlu0 %706, %v93
  %v708 = vpop.permute.xlu0 %707
  %711 = vset.pattern.permute.xlu0 0
  %712 = vperm.xlu0 %711, %v94
  %v713 = vpop.permute.xlu0 %712
  %716 = vset.pattern.permute.xlu0 0
  %717 = vperm.xlu0 %716, %v95
  %v718 = vpop.permute.xlu0 %717
  %721 = vset.pattern.permute.xlu0 0
  %722 = vperm.xlu0 %721, %v96
  %v723 = vpop.permute.xlu0 %722
  %726 = vset.pattern.permute.xlu0 0
  %727 = vperm.xlu0 %726, %v97
  %v728 = vpop.permute.xlu0 %727
  %731 = vset.pattern.permute.xlu0 0
  %732 = vperm.xlu0 %731, %v98
  %v733 = vpop.permute.xlu0 %732
  %736 = vset.pattern.permute.xlu0 0
  %737 = vperm.xlu0 %736, %v99
  %v738 = vpop.permute.xlu0 %737
  %741 = vset.pattern.permute.xlu0 0
  %742 = vperm.xlu0 %741, %v100
  %v743 = vpop.permute.xlu0 %742
  %746 = vset.pattern.permute.xlu0 0
  %747 = vperm.xlu0 %746, %v101
  %v748 = vpop.permute.xlu0 %747
  %751 = vset.pattern.permute.xlu0 0
  %752 = vperm.xlu0 %751, %v102
  %v753 = vpop.permute.xlu0 %752
  %756 = vset.pattern.permute.xlu0 0
  %757 = vperm.xlu0 %756, %v103
  %v758 = vpop.permute.xlu0 %757
  %761 = vset.pattern.permute.xlu0 0
  %762 = vperm.xlu0 %761, %v104
  %v763 = vpop.permute.xlu0 %762
  %766 = vset.pattern.permute.xlu0 0
  %767 = vperm.xlu0 %766, %v105
  %v768 = vpop.permute.xlu0 %767
  %771 = vset.pattern.permute.xlu0 0
  %772 = vperm.xlu0 %771, %v106
  %v773 = vpop.permute.xlu0 %772
  %776 = vset.pattern.permute.xlu0 0
  %777 = vperm.xlu0 %776, %v107
  %v778 = vpop.permute.xlu0 %777
  %781 = vset.pattern.permute.xlu0 0
  %782 = vperm.xlu0 %781, %v108
  %v783 = vpop.permute.xlu0 %782
  %786 = vset.pattern.permute.xlu0 0
  %787 = vperm.xlu0 %786, %v109
  %v788 = vpop.permute.xlu0 %787
  %791 = vset.pattern.permute.xlu0 0
  %792 = vperm.xlu0 %791, %v110
  %v793 = vpop.permute.xlu0 %792
  %796 = vset.pattern.permute.xlu0 0
  %797 = vperm.xlu0 %796, %v111
  %v798 = vpop.permute.xlu0 %797
  %801 = vset.pattern.permute.xlu0 0
  %802 = vperm.xlu0 %801, %v112
  %v803 = vpop.permute.xlu0 %802
  %806 = vset.pattern.permute.xlu0 0
  %807 = vperm.xlu0 %806, %v113
  %v808 = vpop.permute.xlu0 %807
  %811 = vset.pattern.permute.xlu0 0
  %812 = vperm.xlu0 %811, %v114
  %v813 = vpop.permute.xlu0 %812
  %816 = vset.pattern.permute.xlu0 0
  %817 = vperm.xlu0 %816, %v115
  %v818 = vpop.permute.xlu0 %817
  %821 = vset.pattern.permute.xlu0 0
  %822 = vperm.xlu0 %821, %v116
  %v823 = vpop.permute.xlu0 %822
  %826 = vset.pattern.permute.xlu0 0
  %827 = vperm.xlu0 %826, %v117
  %v828 = vpop.permute.xlu0 %827
  %831 = vset.pattern.permute.xlu0 0
  %832 = vperm.xlu0 %831, %v118
  %v833 = vpop.permute.xlu0 %832
  %836 = vset.pattern.permute.xlu0 0
  %837 = vperm.xlu0 %836, %v119
  %v838 = vpop.permute.xlu0 %837
  %841 = vset.pattern.permute.xlu0 0
  %842 = vperm.xlu0 %841, %v120
  %v843 = vpop.permute.xlu0 %842
  %846 = vset.pattern.permute.xlu0 0
  %847 = vperm.xlu0 %846, %v121
  %v848 = vpop.permute.xlu0 %847
  %851 = vset.pattern.permute.xlu0 0
  %852 = vperm.xlu0 %851, %v122
  %v853 = vpop.permute.xlu0 %852
  %856 = vset.pattern.permute.xlu0 0
  %857 = vperm.xlu0 %856, %v123
  %v858 = vpop.permute.xlu0 %857
  %861 = vset.pattern.permute.xlu0 0
  %862 = vperm.xlu0 %861, %v124
  %v863 = vpop.permute.xlu0 %862
  %866 = vset.pattern.permute.xlu0 0
  %867 = vperm.xlu0 %866, %v125
  %v868 = vpop.permute.xlu0 %867
  %871 = vset.pattern.permute.xlu0 0
  %872 = vperm.xlu0 %871, %v126
  %v873 = vpop.permute.xlu0 %872
  %876 = vset.pattern.permute.xlu0 0
  %877 = vperm.xlu0 %876, %v127
  %v878 = vpop.permute.xlu0 %877
  %881 = vset.pattern.permute.xlu0 0
  %882 = vperm.xlu0 %881, %v128
  %v883 = vpop.permute.xlu0 %882
  %886 = vset.pattern.permute.xlu0 0
  %887 = vperm.xlu0 %886, %v129
  %v888 = vpop.permute.xlu0 %887
  %891 = vset.pattern.permute.xlu0 0
  %892 = vperm.xlu0 %891, %v130
  %v893 = vpop.permute.xlu0 %892
  %896 = vset.pattern.permute.xlu0 0
  %897 = vperm.xlu0 %896, %v131
  %v898 = vpop.permute.xlu0 %897
  %901 = vset.pattern.permute.xlu0 0
  %902 = vperm.xlu0 %901, %v132
  %v903 = vpop.permute.xlu0 %902
  %906 = vset.pattern.permute.xlu0 0
  %907 = vperm.xlu0 %906, %v133
  %v908 = vpop.permute.xlu0 %907
  %911 = vset.pattern.permute.xlu0 0
  %912 = vperm.xlu0 %911, %v134
  %v913 = vpop.permute.xlu0 %912
  %916 = vset.pattern.permute.xlu0 0
  %917 = vperm.xlu0 %916, %v135
  %v918 = vpop.permute.xlu0 %917
  %921 = vset.pattern.permute.xlu0 0
  %922 = vperm.xlu0 %921, %v136
  %v923 = vpop.permute.xlu0 %922
  %926 = vset.pattern.permute.xlu0 0
  %927 = vperm.xlu0 %926, %v137
  %v928 = vpop.permute.xlu0 %927
  %931 = vset.pattern.permute.xlu0 0
  %932 = vperm.xlu0 %931, %v138
  %v933 = vpop.permute.xlu0 %932
  %936 = vset.pattern.permute.xlu0 0
  %937 = vperm.xlu0 %936, %v139
  %v938 = vpop.permute.xlu0 %937
  %941 = vset.pattern.permute.xlu0 0
  %942 = vperm.xlu0 %941, %v140
  %v943 = vpop.permute.xlu0 %942
  %946 = vset.pattern.permute.xlu0 0
  %947 = vperm.xlu0 %946, %v141
  %v948 = vpop.permute.xlu0 %947
  %951 = vset.pattern.permute.xlu0 0
  %952 = vperm.xlu0 %951, %v142
  %v953 = vpop.permute.xlu0 %952
  %956 = vset.pattern.permute.xlu0 0
  %957 = vperm.xlu0 %956, %v143
  %v958 = vpop.permute.xlu0 %957
  %961 = vset.pattern.permute.xlu0 0
  %962 = vperm.xlu0 %961, %v144
  %v963 = vpop.permute.xlu0 %962
  %966 = vset.pattern.permute.xlu0 0
  %967 = vperm.xlu0 %966, %v145
  %v968 = vpop.permute.xlu0 %967
  %971 = vset.pattern.permute.xlu0 0
  %972 = vperm.xlu0 %971, %v146
  %v973 = vpop.permute.xlu0 %972
  %976 = vset.pattern.permute.xlu0 0
  %977 = vperm.xlu0 %976, %v147
  %v978 = vpop.permute.xlu0 %977
  %981 = vset.pattern.permute.xlu0 0
  %982 = vperm.xlu0 %981, %v148
  %v983 = vpop.permute.xlu0 %982
  %986 = vset.pattern.permute.xlu0 0
  %987 = vperm.xlu0 %986, %v149
  %v988 = vpop.permute.xlu0 %987
  %991 = vset.pattern.permute.xlu0 0
  %992 = vperm.xlu0 %991, %v150
  %v993 = vpop.permute.xlu0 %992
  %996 = vset.pattern.permute.xlu0 0
  %997 = vperm.xlu0 %996, %v151
  %v998 = vpop.permute.xlu0 %997
  %1001 = vset.pattern.permute.xlu0 0
  %1002 = vperm.xlu0 %1001, %v152
  %v1003 = vpop.permute.xlu0 %1002
  %1006 = vset.pattern.permute.xlu0 0
  %1007 = vperm.xlu0 %1006, %v153
  %v1008 = vpop.permute.xlu0 %1007
  %1011 = vset.pattern.permute.xlu0 0
  %1012 = vperm.xlu0 %1011, %v154
  %v1013 = vpop.permute.xlu0 %1012
  %1016 = vset.pattern.permute.xlu0 0
  %1017 = vperm.xlu0 %1016, %v155
  %v1018 = vpop.permute.xlu0 %1017
  %1021 = vset.pattern.permute.xlu0 0
  %1022 = vperm.xlu0 %1021, %v156
  %v1023 = vpop.permute.xlu0 %1022
  %1026 = vset.pattern.permute.xlu0 0
  %1027 = vperm.xlu0 %1026, %v157
  %v1028 = vpop.permute.xlu0 %1027
  %1031 = vset.pattern.permute.xlu0 0
  %1032 = vperm.xlu0 %1031, %v158
  %v1033 = vpop.permute.xlu0 %1032
  %1036 = vset.pattern.permute.xlu0 0
  %1037 = vperm.xlu0 %1036, %v159
  %v1038 = vpop.permute.xlu0 %1037
  %1041 = vset.pattern.permute.xlu0 0
  %1042 = vperm.xlu0 %1041, %v160
  %v1043 = vpop.permute.xlu0 %1042
  %1046 = vset.pattern.permute.xlu0 0
  %1047 = vperm.xlu0 %1046, %v161
  %v1048 = vpop.permute.xlu0 %1047
  %1051 = vset.pattern.permute.xlu0 0
  %1052 = vperm.xlu0 %1051, %v162
  %v1053 = vpop.permute.xlu0 %1052
  %1056 = vset.pattern.permute.xlu0 0
  %1057 = vperm.xlu0 %1056, %v163
  %v1058 = vpop.permute.xlu0 %1057
  %1061 = vset.pattern.permute.xlu0 0
  %1062 = vperm.xlu0 %1061, %v164
  %v1063 = vpop.permute.xlu0 %1062
  %1066 = vset.pattern.permute.xlu0 0
  %1067 = vperm.xlu0 %1066, %v165
  %v1068 = vpop.permute.xlu0 %1067
  %1071 = vset.pattern.permute.xlu0 0
  %1072 = vperm.xlu0 %1071, %v166
  %v1073 = vpop.permute.xlu0 %1072
  %1076 = vset.pattern.permute.xlu0 0
  %1077 = vperm.xlu0 %1076, %v167
  %v1078 = vpop.permute.xlu0 %1077
  %1081 = vset.pattern.permute.xlu0 0
  %1082 = vperm.xlu0 %1081, %v168
  %v1083 = vpop.permute.xlu0 %1082
  %1086 = vset.pattern.permute.xlu0 0
  %1087 = vperm.xlu0 %1086, %v169
  %v1088 = vpop.permute.xlu0 %1087
  %1091 = vset.pattern.permute.xlu0 0
  %1092 = vperm.xlu0 %1091, %v170
  %v1093 = vpop.permute.xlu0 %1092
  %1096 = vset.pattern.permute.xlu0 0
  %1097 = vperm.xlu0 %1096, %v171
  %v1098 = vpop.permute.xlu0 %1097
  %1101 = vset.pattern.permute.xlu0 0
  %1102 = vperm.xlu0 %1101, %v172
  %v1103 = vpop.permute.xlu0 %1102
  %1106 = vset.pattern.permute.xlu0 0
  %1107 = vperm.xlu0 %1106, %v173
  %v1108 = vpop.permute.xlu0 %1107
  %v1110 = vmul.f32 %v174, %v333
  %v1111 = vmul.f32 %v175, %v338
  %v1112 = vmul.f32 %v176, %v343
  %v1113 = vmul.f32 %v177, %v348
  %v1114 = vmul.f32 %v178, %v353
  %v1115 = vmul.f32 %v179, %v358
  %v1116 = vmul.f32 %v180, %v363
  %v1117 = vmul.f32 %v181, %v368
  %v1118 = vmul.f32 %v182, %v373
  %v1119 = vmul.f32 %v183, %v378
  %v1120 = vmul.f32 %v184, %v383
  %v1121 = vmul.f32 %v185, %v388
  %v1122 = vmul.f32 %v186, %v393
  %v1123 = vmul.f32 %v187, %v398
  %v1124 = vmul.f32 %v188, %v403
  %v1125 = vmul.f32 %v189, %v408
  %v1126 = vmul.f32 %v190, %v413
  %v1127 = vmul.f32 %v191, %v418
  %v1128 = vmul.f32 %v192, %v423
  %v1129 = vmul.f32 %v193, %v428
  %v1130 = vmul.f32 %v194, %v433
  %v1131 = vmul.f32 %v195, %v438
  %v1132 = vmul.f32 %v196, %v443
  %v1133 = vmul.f32 %v197, %v448
  %v1134 = vmul.f32 %v198, %v453
  %v1135 = vmul.f32 %v199, %v458
  %v1136 = vmul.f32 %v200, %v463
  %v1137 = vmul.f32 %v201, %v468
  %v1138 = vmul.f32 %v202, %v473
  %v1139 = vmul.f32 %v203, %v478
  %v1140 = vmul.f32 %v204, %v483
  %v1141 = vmul.f32 %v205, %v488
  %v1142 = vmul.f32 %v206, %v493
  %v1143 = vmul.f32 %v207, %v498
  %v1144 = vmul.f32 %v208, %v503
  %v1145 = vmul.f32 %v209, %v508
  %v1146 = vmul.f32 %v210, %v513
  %v1147 = vmul.f32 %v211, %v518
  %v1148 = vmul.f32 %v212, %v523
  %v1149 = vmul.f32 %v213, %v528
  %v1150 = vmul.f32 %v214, %v533
  %v1151 = vmul.f32 %v215, %v538
  %v1152 = vmul.f32 %v216, %v543
  %v1153 = vmul.f32 %v217, %v548
  %v1154 = vmul.f32 %v218, %v553
  %v1155 = vmul.f32 %v219, %v558
  %v1156 = vmul.f32 %v220, %v563
  %v1157 = vmul.f32 %v221, %v568
  %v1158 = vmul.f32 %v222, %v573
  %v1159 = vmul.f32 %v223, %v578
  %v1160 = vmul.f32 %v224, %v583
  %v1161 = vmul.f32 %v225, %v588
  %v1162 = vmul.f32 %v226, %v593
  %v1163 = vmul.f32 %v227, %v598
  %v1164 = vmul.f32 %v228, %v603
  %v1165 = vmul.f32 %v229, %v608
  %v1166 = vmul.f32 %v230, %v613
  %v1167 = vmul.f32 %v231, %v618
  %v1168 = vmul.f32 %v232, %v623
  %v1169 = vmul.f32 %v233, %v628
  %v1170 = vmul.f32 %v234, %v633
  %v1171 = vmul.f32 %v235, %v638
  %v1172 = vmul.f32 %v236, %v643
  %v1173 = vmul.f32 %v237, %v648
  %v1174 = vmul.f32 %v238, %v653
  %v1175 = vmul.f32 %v239, %v658
  %v1176 = vmul.f32 %v240, %v663
  %v1177 = vmul.f32 %v241, %v668
  %v1178 = vmul.f32 %v242, %v673
  %v1179 = vmul.f32 %v243, %v678
  %v1180 = vmul.f32 %v244, %v683
  %v1181 = vmul.f32 %v245, %v688
  %v1182 = vmul.f32 %v246, %v693
  %v1183 = vmul.f32 %v247, %v698
  %v1184 = vmul.f32 %v248, %v703
  %v1185 = vmul.f32 %v249, %v708
  %v1186 = vmul.f32 %v250, %v713
  %v1187 = vmul.f32 %v251, %v718
  %v1188 = vmul.f32 %v252, %v723
  %v1189 = vmul.f32 %v253, %v728
  %v1190 = vmul.f32 %v254, %v733
  %v1191 = vmul.f32 %v255, %v738
  %v1192 = vmul.f32 %v256, %v743
  %v1193 = vmul.f32 %v257, %v748
  %v1194 = vmul.f32 %v258, %v753
  %v1195 = vmul.f32 %v259, %v758
  %v1196 = vmul.f32 %v260, %v763
  %v1197 = vmul.f32 %v261, %v768
  %v1198 = vmul.f32 %v262, %v773
  %v1199 = vmul.f32 %v263, %v778
  %v1200 = vmul.f32 %v264, %v783
  %v1201 = vmul.f32 %v265, %v788
  %v1202 = vmul.f32 %v266, %v793
  %v1203 = vmul.f32 %v267, %v798
  %v1204 = vmul.f32 %v268, %v803
  %v1205 = vmul.f32 %v269, %v808
  %v1206 = vmul.f32 %v270, %v813
  %v1207 = vmul.f32 %v271, %v818
  %v1208 = vmul.f32 %v272, %v823
  %v1209 = vmul.f32 %v273, %v828
  %v1210 = vmul.f32 %v274, %v833
  %v1211 = vmul.f32 %v275, %v838
  %v1212 = vmul.f32 %v276, %v843
  %v1213 = vmul.f32 %v277, %v848
  %v1214 = vmul.f32 %v278, %v853
  %v1215 = vmul.f32 %v279, %v858
  %v1216 = vmul.f32 %v280, %v863
  %v1217 = vmul.f32 %v281, %v868
  %v1218 = vmul.f32 %v282, %v873
  %v1219 = vmul.f32 %v283, %v878
  %v1220 = vmul.f32 %v284, %v883
  %v1221 = vmul.f32 %v285, %v888
  %v1222 = vmul.f32 %v286, %v893
  %v1223 = vmul.f32 %v287, %v898
  %v1224 = vmul.f32 %v288, %v903
  %v1225 = vmul.f32 %v289, %v908
  %v1226 = vmul.f32 %v290, %v913
  %v1227 = vmul.f32 %v291, %v918
  %v1228 = vmul.f32 %v292, %v923
  %v1229 = vmul.f32 %v293, %v928
  %v1230 = vmul.f32 %v294, %v933
  %v1231 = vmul.f32 %v295, %v938
  %v1232 = vmul.f32 %v296, %v943
  %v1233 = vmul.f32 %v297, %v948
  %v1234 = vmul.f32 %v298, %v953
  %v1235 = vmul.f32 %v299, %v958
  %v1236 = vmul.f32 %v300, %v963
  %v1237 = vmul.f32 %v301, %v968
  %v1238 = vmul.f32 %v302, %v973
  %v1239 = vmul.f32 %v303, %v978
  %v1240 = vmul.f32 %v304, %v983
  %v1241 = vmul.f32 %v305, %v988
  %v1242 = vmul.f32 %v306, %v993
  %v1243 = vmul.f32 %v307, %v998
  %v1244 = vmul.f32 %v308, %v1003
  %v1245 = vmul.f32 %v309, %v1008
  %v1246 = vmul.f32 %v310, %v1013
  %v1247 = vmul.f32 %v311, %v1018
  %v1248 = vmul.f32 %v312, %v1023
  %v1249 = vmul.f32 %v313, %v1028
  %v1250 = vmul.f32 %v314, %v1033
  %v1251 = vmul.f32 %v315, %v1038
  %v1252 = vmul.f32 %v316, %v1043
  %v1253 = vmul.f32 %v317, %v1048
  %v1254 = vmul.f32 %v318, %v1053
  %v1255 = vmul.f32 %v319, %v1058
  %v1256 = vmul.f32 %v320, %v1063
  %v1257 = vmul.f32 %v321, %v1068
  %v1258 = vmul.f32 %v322, %v1073
  %v1259 = vmul.f32 %v323, %v1078
  %v1260 = vmul.f32 %v324, %v1083
  %v1261 = vmul.f32 %v325, %v1088
  %v1262 = vmul.f32 %v326, %v1093
  %v1263 = vmul.f32 %v327, %v1098
  %v1264 = vmul.f32 %v328, %v1103
  %v1265 = vmul.f32 %v329, %v1108
  %1266 = vset.pattern.permute.xlu0 1
  %1267 = vperm.xlu0 %1266, %v18
  %v1268 = vpop.permute.xlu0 %1267
  %1270 = vset.pattern.permute.xlu0 1
  %1271 = vperm.xlu0 %1270, %v19
  %v1272 = vpop.permute.xlu0 %1271
  %1274 = vset.pattern.permute.xlu0 1
  %1275 = vperm.xlu0 %1274, %v20
  %v1276 = vpop.permute.xlu0 %1275
  %1278 = vset.pattern.permute.xlu0 1
  %1279 = vperm.xlu0 %1278, %v21
  %v1280 = vpop.permute.xlu0 %1279
  %1282 = vset.pattern.permute.xlu0 1
  %1283 = vperm.xlu0 %1282, %v22
  %v1284 = vpop.permute.xlu0 %1283
  %1286 = vset.pattern.permute.xlu0 1
  %1287 = vperm.xlu0 %1286, %v23
  %v1288 = vpop.permute.xlu0 %1287
  %1290 = vset.pattern.permute.xlu0 1
  %1291 = vperm.xlu0 %1290, %v24
  %v1292 = vpop.permute.xlu0 %1291
  %1294 = vset.pattern.permute.xlu0 1
  %1295 = vperm.xlu0 %1294, %v25
  %v1296 = vpop.permute.xlu0 %1295
  %1298 = vset.pattern.permute.xlu0 1
  %1299 = vperm.xlu0 %1298, %v26
  %v1300 = vpop.permute.xlu0 %1299
  %1302 = vset.pattern.permute.xlu0 1
  %1303 = vperm.xlu0 %1302, %v27
  %v1304 = vpop.permute.xlu0 %1303
  %1306 = vset.pattern.permute.xlu0 1
  %1307 = vperm.xlu0 %1306, %v28
  %v1308 = vpop.permute.xlu0 %1307
  %1310 = vset.pattern.permute.xlu0 1
  %1311 = vperm.xlu0 %1310, %v29
  %v1312 = vpop.permute.xlu0 %1311
  %1314 = vset.pattern.permute.xlu0 1
  %1315 = vperm.xlu0 %1314, %v30
  %v1316 = vpop.permute.xlu0 %1315
  %1318 = vset.pattern.permute.xlu0 1
  %1319 = vperm.xlu0 %1318, %v31
  %v1320 = vpop.permute.xlu0 %1319
  %1322 = vset.pattern.permute.xlu0 1
  %1323 = vperm.xlu0 %1322, %v32
  %v1324 = vpop.permute.xlu0 %1323
  %1326 = vset.pattern.permute.xlu0 1
  %1327 = vperm.xlu0 %1326, %v33
  %v1328 = vpop.permute.xlu0 %1327
  %1330 = vset.pattern.permute.xlu0 1
  %1331 = vperm.xlu0 %1330, %v34
  %v1332 = vpop.permute.xlu0 %1331
  %1334 = vset.pattern.permute.xlu0 1
  %1335 = vperm.xlu0 %1334, %v35
  %v1336 = vpop.permute.xlu0 %1335
  %1338 = vset.pattern.permute.xlu0 1
  %1339 = vperm.xlu0 %1338, %v36
  %v1340 = vpop.permute.xlu0 %1339
  %1342 = vset.pattern.permute.xlu0 1
  %1343 = vperm.xlu0 %1342, %v37
  %v1344 = vpop.permute.xlu0 %1343
  %1346 = vset.pattern.permute.xlu0 1
  %1347 = vperm.xlu0 %1346, %v38
  %v1348 = vpop.permute.xlu0 %1347
  %1350 = vset.pattern.permute.xlu0 1
  %1351 = vperm.xlu0 %1350, %v39
  %v1352 = vpop.permute.xlu0 %1351
  %1354 = vset.pattern.permute.xlu0 1
  %1355 = vperm.xlu0 %1354, %v40
  %v1356 = vpop.permute.xlu0 %1355
  %1358 = vset.pattern.permute.xlu0 1
  %1359 = vperm.xlu0 %1358, %v41
  %v1360 = vpop.permute.xlu0 %1359
  %1362 = vset.pattern.permute.xlu0 1
  %1363 = vperm.xlu0 %1362, %v42
  %v1364 = vpop.permute.xlu0 %1363
  %1366 = vset.pattern.permute.xlu0 1
  %1367 = vperm.xlu0 %1366, %v43
  %v1368 = vpop.permute.xlu0 %1367
  %1370 = vset.pattern.permute.xlu0 1
  %1371 = vperm.xlu0 %1370, %v44
  %v1372 = vpop.permute.xlu0 %1371
  %1374 = vset.pattern.permute.xlu0 1
  %1375 = vperm.xlu0 %1374, %v45
  %v1376 = vpop.permute.xlu0 %1375
  %1378 = vset.pattern.permute.xlu0 1
  %1379 = vperm.xlu0 %1378, %v46
  %v1380 = vpop.permute.xlu0 %1379
  %1382 = vset.pattern.permute.xlu0 1
  %1383 = vperm.xlu0 %1382, %v47
  %v1384 = vpop.permute.xlu0 %1383
  %1386 = vset.pattern.permute.xlu0 1
  %1387 = vperm.xlu0 %1386, %v48
  %v1388 = vpop.permute.xlu0 %1387
  %1390 = vset.pattern.permute.xlu0 1
  %1391 = vperm.xlu0 %1390, %v49
  %v1392 = vpop.permute.xlu0 %1391
  %1394 = vset.pattern.permute.xlu0 1
  %1395 = vperm.xlu0 %1394, %v50
  %v1396 = vpop.permute.xlu0 %1395
  %1398 = vset.pattern.permute.xlu0 1
  %1399 = vperm.xlu0 %1398, %v51
  %v1400 = vpop.permute.xlu0 %1399
  %1402 = vset.pattern.permute.xlu0 1
  %1403 = vperm.xlu0 %1402, %v52
  %v1404 = vpop.permute.xlu0 %1403
  %1406 = vset.pattern.permute.xlu0 1
  %1407 = vperm.xlu0 %1406, %v53
  %v1408 = vpop.permute.xlu0 %1407
  %1410 = vset.pattern.permute.xlu0 1
  %1411 = vperm.xlu0 %1410, %v54
  %v1412 = vpop.permute.xlu0 %1411
  %1414 = vset.pattern.permute.xlu0 1
  %1415 = vperm.xlu0 %1414, %v55
  %v1416 = vpop.permute.xlu0 %1415
  %1418 = vset.pattern.permute.xlu0 1
  %1419 = vperm.xlu0 %1418, %v56
  %v1420 = vpop.permute.xlu0 %1419
  %1422 = vset.pattern.permute.xlu0 1
  %1423 = vperm.xlu0 %1422, %v57
  %v1424 = vpop.permute.xlu0 %1423
  %1426 = vset.pattern.permute.xlu0 1
  %1427 = vperm.xlu0 %1426, %v58
  %v1428 = vpop.permute.xlu0 %1427
  %1430 = vset.pattern.permute.xlu0 1
  %1431 = vperm.xlu0 %1430, %v59
  %v1432 = vpop.permute.xlu0 %1431
  %1434 = vset.pattern.permute.xlu0 1
  %1435 = vperm.xlu0 %1434, %v60
  %v1436 = vpop.permute.xlu0 %1435
  %1438 = vset.pattern.permute.xlu0 1
  %1439 = vperm.xlu0 %1438, %v61
  %v1440 = vpop.permute.xlu0 %1439
  %1442 = vset.pattern.permute.xlu0 1
  %1443 = vperm.xlu0 %1442, %v62
  %v1444 = vpop.permute.xlu0 %1443
  %1446 = vset.pattern.permute.xlu0 1
  %1447 = vperm.xlu0 %1446, %v63
  %v1448 = vpop.permute.xlu0 %1447
  %1450 = vset.pattern.permute.xlu0 1
  %1451 = vperm.xlu0 %1450, %v64
  %v1452 = vpop.permute.xlu0 %1451
  %1454 = vset.pattern.permute.xlu0 1
  %1455 = vperm.xlu0 %1454, %v65
  %v1456 = vpop.permute.xlu0 %1455
  %1458 = vset.pattern.permute.xlu0 1
  %1459 = vperm.xlu0 %1458, %v66
  %v1460 = vpop.permute.xlu0 %1459
  %1462 = vset.pattern.permute.xlu0 1
  %1463 = vperm.xlu0 %1462, %v67
  %v1464 = vpop.permute.xlu0 %1463
  %1466 = vset.pattern.permute.xlu0 1
  %1467 = vperm.xlu0 %1466, %v68
  %v1468 = vpop.permute.xlu0 %1467
  %1470 = vset.pattern.permute.xlu0 1
  %1471 = vperm.xlu0 %1470, %v69
  %v1472 = vpop.permute.xlu0 %1471
  %1474 = vset.pattern.permute.xlu0 1
  %1475 = vperm.xlu0 %1474, %v70
  %v1476 = vpop.permute.xlu0 %1475
  %1478 = vset.pattern.permute.xlu0 1
  %1479 = vperm.xlu0 %1478, %v71
  %v1480 = vpop.permute.xlu0 %1479
  %1482 = vset.pattern.permute.xlu0 1
  %1483 = vperm.xlu0 %1482, %v72
  %v1484 = vpop.permute.xlu0 %1483
  %1486 = vset.pattern.permute.xlu0 1
  %1487 = vperm.xlu0 %1486, %v73
  %v1488 = vpop.permute.xlu0 %1487
  %1490 = vset.pattern.permute.xlu0 1
  %1491 = vperm.xlu0 %1490, %v74
  %v1492 = vpop.permute.xlu0 %1491
  %1494 = vset.pattern.permute.xlu0 1
  %1495 = vperm.xlu0 %1494, %v75
  %v1496 = vpop.permute.xlu0 %1495
  %1498 = vset.pattern.permute.xlu0 1
  %1499 = vperm.xlu0 %1498, %v76
  %v1500 = vpop.permute.xlu0 %1499
  %1502 = vset.pattern.permute.xlu0 1
  %1503 = vperm.xlu0 %1502, %v77
  %v1504 = vpop.permute.xlu0 %1503
  %1506 = vset.pattern.permute.xlu0 1
  %1507 = vperm.xlu0 %1506, %v78
  %v1508 = vpop.permute.xlu0 %1507
  %1510 = vset.pattern.permute.xlu0 1
  %1511 = vperm.xlu0 %1510, %v79
  %v1512 = vpop.permute.xlu0 %1511
  %1514 = vset.pattern.permute.xlu0 1
  %1515 = vperm.xlu0 %1514, %v80
  %v1516 = vpop.permute.xlu0 %1515
  %1518 = vset.pattern.permute.xlu0 1
  %1519 = vperm.xlu0 %1518, %v81
  %v1520 = vpop.permute.xlu0 %1519
  %1522 = vset.pattern.permute.xlu0 1
  %1523 = vperm.xlu0 %1522, %v82
  %v1524 = vpop.permute.xlu0 %1523
  %1526 = vset.pattern.permute.xlu0 1
  %1527 = vperm.xlu0 %1526, %v83
  %v1528 = vpop.permute.xlu0 %1527
  %1530 = vset.pattern.permute.xlu0 1
  %1531 = vperm.xlu0 %1530, %v84
  %v1532 = vpop.permute.xlu0 %1531
  %1534 = vset.pattern.permute.xlu0 1
  %1535 = vperm.xlu0 %1534, %v85
  %v1536 = vpop.permute.xlu0 %1535
  %1538 = vset.pattern.permute.xlu0 1
  %1539 = vperm.xlu0 %1538, %v86
  %v1540 = vpop.permute.xlu0 %1539
  %1542 = vset.pattern.permute.xlu0 1
  %1543 = vperm.xlu0 %1542, %v87
  %v1544 = vpop.permute.xlu0 %1543
  %1546 = vset.pattern.permute.xlu0 1
  %1547 = vperm.xlu0 %1546, %v88
  %v1548 = vpop.permute.xlu0 %1547
  %1550 = vset.pattern.permute.xlu0 1
  %1551 = vperm.xlu0 %1550, %v89
  %v1552 = vpop.permute.xlu0 %1551
  %1554 = vset.pattern.permute.xlu0 1
  %1555 = vperm.xlu0 %1554, %v90
  %v1556 = vpop.permute.xlu0 %1555
  %1558 = vset.pattern.permute.xlu0 1
  %1559 = vperm.xlu0 %1558, %v91
  %v1560 = vpop.permute.xlu0 %1559
  %1562 = vset.pattern.permute.xlu0 1
  %1563 = vperm.xlu0 %1562, %v92
  %v1564 = vpop.permute.xlu0 %1563
  %1566 = vset.pattern.permute.xlu0 1
  %1567 = vperm.xlu0 %1566, %v93
  %v1568 = vpop.permute.xlu0 %1567
  %1570 = vset.pattern.permute.xlu0 1
  %1571 = vperm.xlu0 %1570, %v94
  %v1572 = vpop.permute.xlu0 %1571
  %1574 = vset.pattern.permute.xlu0 1
  %1575 = vperm.xlu0 %1574, %v95
  %v1576 = vpop.permute.xlu0 %1575
  %1578 = vset.pattern.permute.xlu0 1
  %1579 = vperm.xlu0 %1578, %v96
  %v1580 = vpop.permute.xlu0 %1579
  %1582 = vset.pattern.permute.xlu0 1
  %1583 = vperm.xlu0 %1582, %v97
  %v1584 = vpop.permute.xlu0 %1583
  %1586 = vset.pattern.permute.xlu0 1
  %1587 = vperm.xlu0 %1586, %v98
  %v1588 = vpop.permute.xlu0 %1587
  %1590 = vset.pattern.permute.xlu0 1
  %1591 = vperm.xlu0 %1590, %v99
  %v1592 = vpop.permute.xlu0 %1591
  %1594 = vset.pattern.permute.xlu0 1
  %1595 = vperm.xlu0 %1594, %v100
  %v1596 = vpop.permute.xlu0 %1595
  %1598 = vset.pattern.permute.xlu0 1
  %1599 = vperm.xlu0 %1598, %v101
  %v1600 = vpop.permute.xlu0 %1599
  %1602 = vset.pattern.permute.xlu0 1
  %1603 = vperm.xlu0 %1602, %v102
  %v1604 = vpop.permute.xlu0 %1603
  %1606 = vset.pattern.permute.xlu0 1
  %1607 = vperm.xlu0 %1606, %v103
  %v1608 = vpop.permute.xlu0 %1607
  %1610 = vset.pattern.permute.xlu0 1
  %1611 = vperm.xlu0 %1610, %v104
  %v1612 = vpop.permute.xlu0 %1611
  %1614 = vset.pattern.permute.xlu0 1
  %1615 = vperm.xlu0 %1614, %v105
  %v1616 = vpop.permute.xlu0 %1615
  %1618 = vset.pattern.permute.xlu0 1
  %1619 = vperm.xlu0 %1618, %v106
  %v1620 = vpop.permute.xlu0 %1619
  %1622 = vset.pattern.permute.xlu0 1
  %1623 = vperm.xlu0 %1622, %v107
  %v1624 = vpop.permute.xlu0 %1623
  %1626 = vset.pattern.permute.xlu0 1
  %1627 = vperm.xlu0 %1626, %v108
  %v1628 = vpop.permute.xlu0 %1627
  %1630 = vset.pattern.permute.xlu0 1
  %1631 = vperm.xlu0 %1630, %v109
  %v1632 = vpop.permute.xlu0 %1631
  %1634 = vset.pattern.permute.xlu0 1
  %1635 = vperm.xlu0 %1634, %v110
  %v1636 = vpop.permute.xlu0 %1635
  %1638 = vset.pattern.permute.xlu0 1
  %1639 = vperm.xlu0 %1638, %v111
  %v1640 = vpop.permute.xlu0 %1639
  %1642 = vset.pattern.permute.xlu0 1
  %1643 = vperm.xlu0 %1642, %v112
  %v1644 = vpop.permute.xlu0 %1643
  %1646 = vset.pattern.permute.xlu0 1
  %1647 = vperm.xlu0 %1646, %v113
  %v1648 = vpop.permute.xlu0 %1647
  %1650 = vset.pattern.permute.xlu0 1
  %1651 = vperm.xlu0 %1650, %v114
  %v1652 = vpop.permute.xlu0 %1651
  %1654 = vset.pattern.permute.xlu0 1
  %1655 = vperm.xlu0 %1654, %v115
  %v1656 = vpop.permute.xlu0 %1655
  %1658 = vset.pattern.permute.xlu0 1
  %1659 = vperm.xlu0 %1658, %v116
  %v1660 = vpop.permute.xlu0 %1659
  %1662 = vset.pattern.permute.xlu0 1
  %1663 = vperm.xlu0 %1662, %v117
  %v1664 = vpop.permute.xlu0 %1663
  %1666 = vset.pattern.permute.xlu0 1
  %1667 = vperm.xlu0 %1666, %v118
  %v1668 = vpop.permute.xlu0 %1667
  %1670 = vset.pattern.permute.xlu0 1
  %1671 = vperm.xlu0 %1670, %v119
  %v1672 = vpop.permute.xlu0 %1671
  %1674 = vset.pattern.permute.xlu0 1
  %1675 = vperm.xlu0 %1674, %v120
  %v1676 = vpop.permute.xlu0 %1675
  %1678 = vset.pattern.permute.xlu0 1
  %1679 = vperm.xlu0 %1678, %v121
  %v1680 = vpop.permute.xlu0 %1679
  %1682 = vset.pattern.permute.xlu0 1
  %1683 = vperm.xlu0 %1682, %v122
  %v1684 = vpop.permute.xlu0 %1683
  %1686 = vset.pattern.permute.xlu0 1
  %1687 = vperm.xlu0 %1686, %v123
  %v1688 = vpop.permute.xlu0 %1687
  %1690 = vset.pattern.permute.xlu0 1
  %1691 = vperm.xlu0 %1690, %v124
  %v1692 = vpop.permute.xlu0 %1691
  %1694 = vset.pattern.permute.xlu0 1
  %1695 = vperm.xlu0 %1694, %v125
  %v1696 = vpop.permute.xlu0 %1695
  %1698 = vset.pattern.permute.xlu0 1
  %1699 = vperm.xlu0 %1698, %v126
  %v1700 = vpop.permute.xlu0 %1699
  %1702 = vset.pattern.permute.xlu0 1
  %1703 = vperm.xlu0 %1702, %v127
  %v1704 = vpop.permute.xlu0 %1703
  %1706 = vset.pattern.permute.xlu0 1
  %1707 = vperm.xlu0 %1706, %v128
  %v1708 = vpop.permute.xlu0 %1707
  %1710 = vset.pattern.permute.xlu0 1
  %1711 = vperm.xlu0 %1710, %v129
  %v1712 = vpop.permute.xlu0 %1711
  %1714 = vset.pattern.permute.xlu0 1
  %1715 = vperm.xlu0 %1714, %v130
  %v1716 = vpop.permute.xlu0 %1715
  %1718 = vset.pattern.permute.xlu0 1
  %1719 = vperm.xlu0 %1718, %v131
  %v1720 = vpop.permute.xlu0 %1719
  %1722 = vset.pattern.permute.xlu0 1
  %1723 = vperm.xlu0 %1722, %v132
  %v1724 = vpop.permute.xlu0 %1723
  %1726 = vset.pattern.permute.xlu0 1
  %1727 = vperm.xlu0 %1726, %v133
  %v1728 = vpop.permute.xlu0 %1727
  %1730 = vset.pattern.permute.xlu0 1
  %1731 = vperm.xlu0 %1730, %v134
  %v1732 = vpop.permute.xlu0 %1731
  %1734 = vset.pattern.permute.xlu0 1
  %1735 = vperm.xlu0 %1734, %v135
  %v1736 = vpop.permute.xlu0 %1735
  %1738 = vset.pattern.permute.xlu0 1
  %1739 = vperm.xlu0 %1738, %v136
  %v1740 = vpop.permute.xlu0 %1739
  %1742 = vset.pattern.permute.xlu0 1
  %1743 = vperm.xlu0 %1742, %v137
  %v1744 = vpop.permute.xlu0 %1743
  %1746 = vset.pattern.permute.xlu0 1
  %1747 = vperm.xlu0 %1746, %v138
  %v1748 = vpop.permute.xlu0 %1747
  %1750 = vset.pattern.permute.xlu0 1
  %1751 = vperm.xlu0 %1750, %v139
  %v1752 = vpop.permute.xlu0 %1751
  %1754 = vset.pattern.permute.xlu0 1
  %1755 = vperm.xlu0 %1754, %v140
  %v1756 = vpop.permute.xlu0 %1755
  %1758 = vset.pattern.permute.xlu0 1
  %1759 = vperm.xlu0 %1758, %v141
  %v1760 = vpop.permute.xlu0 %1759
  %1762 = vset.pattern.permute.xlu0 1
  %1763 = vperm.xlu0 %1762, %v142
  %v1764 = vpop.permute.xlu0 %1763
  %1766 = vset.pattern.permute.xlu0 1
  %1767 = vperm.xlu0 %1766, %v143
  %v1768 = vpop.permute.xlu0 %1767
  %1770 = vset.pattern.permute.xlu0 1
  %1771 = vperm.xlu0 %1770, %v144
  %v1772 = vpop.permute.xlu0 %1771
  %1774 = vset.pattern.permute.xlu0 1
  %1775 = vperm.xlu0 %1774, %v145
  %v1776 = vpop.permute.xlu0 %1775
  %1778 = vset.pattern.permute.xlu0 1
  %1779 = vperm.xlu0 %1778, %v146
  %v1780 = vpop.permute.xlu0 %1779
  %1782 = vset.pattern.permute.xlu0 1
  %1783 = vperm.xlu0 %1782, %v147
  %v1784 = vpop.permute.xlu0 %1783
  %1786 = vset.pattern.permute.xlu0 1
  %1787 = vperm.xlu0 %1786, %v148
  %v1788 = vpop.permute.xlu0 %1787
  %1790 = vset.pattern.permute.xlu0 1
  %1791 = vperm.xlu0 %1790, %v149
  %v1792 = vpop.permute.xlu0 %1791
  %1794 = vset.pattern.permute.xlu0 1
  %1795 = vperm.xlu0 %1794, %v150
  %v1796 = vpop.permute.xlu0 %1795
  %1798 = vset.pattern.permute.xlu0 1
  %1799 = vperm.xlu0 %1798, %v151
  %v1800 = vpop.permute.xlu0 %1799
  %1802 = vset.pattern.permute.xlu0 1
  %1803 = vperm.xlu0 %1802, %v152
  %v1804 = vpop.permute.xlu0 %1803
  %1806 = vset.pattern.permute.xlu0 1
  %1807 = vperm.xlu0 %1806, %v153
  %v1808 = vpop.permute.xlu0 %1807
  %1810 = vset.pattern.permute.xlu0 1
  %1811 = vperm.xlu0 %1810, %v154
  %v1812 = vpop.permute.xlu0 %1811
  %1814 = vset.pattern.permute.xlu0 1
  %1815 = vperm.xlu0 %1814, %v155
  %v1816 = vpop.permute.xlu0 %1815
  %1818 = vset.pattern.permute.xlu0 1
  %1819 = vperm.xlu0 %1818, %v156
  %v1820 = vpop.permute.xlu0 %1819
  %1822 = vset.pattern.permute.xlu0 1
  %1823 = vperm.xlu0 %1822, %v157
  %v1824 = vpop.permute.xlu0 %1823
  %1826 = vset.pattern.permute.xlu0 1
  %1827 = vperm.xlu0 %1826, %v158
  %v1828 = vpop.permute.xlu0 %1827
  %1830 = vset.pattern.permute.xlu0 1
  %1831 = vperm.xlu0 %1830, %v159
  %v1832 = vpop.permute.xlu0 %1831
  %1834 = vset.pattern.permute.xlu0 1
  %1835 = vperm.xlu0 %1834, %v160
  %v1836 = vpop.permute.xlu0 %1835
  %1838 = vset.pattern.permute.xlu0 1
  %1839 = vperm.xlu0 %1838, %v161
  %v1840 = vpop.permute.xlu0 %1839
  %1842 = vset.pattern.permute.xlu0 1
  %1843 = vperm.xlu0 %1842, %v162
  %v1844 = vpop.permute.xlu0 %1843
  %1846 = vset.pattern.permute.xlu0 1
  %1847 = vperm.xlu0 %1846, %v163
  %v1848 = vpop.permute.xlu0 %1847
  %1850 = vset.pattern.permute.xlu0 1
  %1851 = vperm.xlu0 %1850, %v164
  %v1852 = vpop.permute.xlu0 %1851
  %1854 = vset.pattern.permute.xlu0 1
  %1855 = vperm.xlu0 %1854, %v165
  %v1856 = vpop.permute.xlu0 %1855
  %1858 = vset.pattern.permute.xlu0 1
  %1859 = vperm.xlu0 %1858, %v166
  %v1860 = vpop.permute.xlu0 %1859
  %1862 = vset.pattern.permute.xlu0 1
  %1863 = vperm.xlu0 %1862, %v167
  %v1864 = vpop.permute.xlu0 %1863
  %1866 = vset.pattern.permute.xlu0 1
  %1867 = vperm.xlu0 %1866, %v168
  %v1868 = vpop.permute.xlu0 %1867
  %1870 = vset.pattern.permute.xlu0 1
  %1871 = vperm.xlu0 %1870, %v169
  %v1872 = vpop.permute.xlu0 %1871
  %1874 = vset.pattern.permute.xlu0 1
  %1875 = vperm.xlu0 %1874, %v170
  %v1876 = vpop.permute.xlu0 %1875
  %1878 = vset.pattern.permute.xlu0 1
  %1879 = vperm.xlu0 %1878, %v171
  %v1880 = vpop.permute.xlu0 %1879
  %1882 = vset.pattern.permute.xlu0 1
  %1883 = vperm.xlu0 %1882, %v172
  %v1884 = vpop.permute.xlu0 %1883
  %1886 = vset.pattern.permute.xlu0 1
  %1887 = vperm.xlu0 %1886, %v173
  %v1888 = vpop.permute.xlu0 %1887
  %v1890 = vadd.f32 %v1110, %v1268
  %v1891 = vadd.f32 %v1111, %v1272
  %v1892 = vadd.f32 %v1112, %v1276
  %v1893 = vadd.f32 %v1113, %v1280
  %v1894 = vadd.f32 %v1114, %v1284
  %v1895 = vadd.f32 %v1115, %v1288
  %v1896 = vadd.f32 %v1116, %v1292
  %v1897 = vadd.f32 %v1117, %v1296
  %v1898 = vadd.f32 %v1118, %v1300
  %v1899 = vadd.f32 %v1119, %v1304
  %v1900 = vadd.f32 %v1120, %v1308
  %v1901 = vadd.f32 %v1121, %v1312
  %v1902 = vadd.f32 %v1122, %v1316
  %v1903 = vadd.f32 %v1123, %v1320
  %v1904 = vadd.f32 %v1124, %v1324
  %v1905 = vadd.f32 %v1125, %v1328
  %v1906 = vadd.f32 %v1126, %v1332
  %v1907 = vadd.f32 %v1127, %v1336
  %v1908 = vadd.f32 %v1128, %v1340
  %v1909 = vadd.f32 %v1129, %v1344
  %v1910 = vadd.f32 %v1130, %v1348
  %v1911 = vadd.f32 %v1131, %v1352
  %v1912 = vadd.f32 %v1132, %v1356
  %v1913 = vadd.f32 %v1133, %v1360
  %v1914 = vadd.f32 %v1134, %v1364
  %v1915 = vadd.f32 %v1135, %v1368
  %v1916 = vadd.f32 %v1136, %v1372
  %v1917 = vadd.f32 %v1137, %v1376
  %v1918 = vadd.f32 %v1138, %v1380
  %v1919 = vadd.f32 %v1139, %v1384
  %v1920 = vadd.f32 %v1140, %v1388
  %v1921 = vadd.f32 %v1141, %v1392
  %v1922 = vadd.f32 %v1142, %v1396
  %v1923 = vadd.f32 %v1143, %v1400
  %v1924 = vadd.f32 %v1144, %v1404
  %v1925 = vadd.f32 %v1145, %v1408
  %v1926 = vadd.f32 %v1146, %v1412
  %v1927 = vadd.f32 %v1147, %v1416
  %v1928 = vadd.f32 %v1148, %v1420
  %v1929 = vadd.f32 %v1149, %v1424
  %v1930 = vadd.f32 %v1150, %v1428
  %v1931 = vadd.f32 %v1151, %v1432
  %v1932 = vadd.f32 %v1152, %v1436
  %v1933 = vadd.f32 %v1153, %v1440
  %v1934 = vadd.f32 %v1154, %v1444
  %v1935 = vadd.f32 %v1155, %v1448
  %v1936 = vadd.f32 %v1156, %v1452
  %v1937 = vadd.f32 %v1157, %v1456
  %v1938 = vadd.f32 %v1158, %v1460
  %v1939 = vadd.f32 %v1159, %v1464
  %v1940 = vadd.f32 %v1160, %v1468
  %v1941 = vadd.f32 %v1161, %v1472
  %v1942 = vadd.f32 %v1162, %v1476
  %v1943 = vadd.f32 %v1163, %v1480
  %v1944 = vadd.f32 %v1164, %v1484
  %v1945 = vadd.f32 %v1165, %v1488
  %v1946 = vadd.f32 %v1166, %v1492
  %v1947 = vadd.f32 %v1167, %v1496
  %v1948 = vadd.f32 %v1168, %v1500
  %v1949 = vadd.f32 %v1169, %v1504
  %v1950 = vadd.f32 %v1170, %v1508
  %v1951 = vadd.f32 %v1171, %v1512
  %v1952 = vadd.f32 %v1172, %v1516
  %v1953 = vadd.f32 %v1173, %v1520
  %v1954 = vadd.f32 %v1174, %v1524
  %v1955 = vadd.f32 %v1175, %v1528
  %v1956 = vadd.f32 %v1176, %v1532
  %v1957 = vadd.f32 %v1177, %v1536
  %v1958 = vadd.f32 %v1178, %v1540
  %v1959 = vadd.f32 %v1179, %v1544
  %v1960 = vadd.f32 %v1180, %v1548
  %v1961 = vadd.f32 %v1181, %v1552
  %v1962 = vadd.f32 %v1182, %v1556
  %v1963 = vadd.f32 %v1183, %v1560
  %v1964 = vadd.f32 %v1184, %v1564
  %v1965 = vadd.f32 %v1185, %v1568
  %v1966 = vadd.f32 %v1186, %v1572
  %v1967 = vadd.f32 %v1187, %v1576
  %v1968 = vadd.f32 %v1188, %v1580
  %v1969 = vadd.f32 %v1189, %v1584
  %v1970 = vadd.f32 %v1190, %v1588
  %v1971 = vadd.f32 %v1191, %v1592
  %v1972 = vadd.f32 %v1192, %v1596
  %v1973 = vadd.f32 %v1193, %v1600
  %v1974 = vadd.f32 %v1194, %v1604
  %v1975 = vadd.f32 %v1195, %v1608
  %v1976 = vadd.f32 %v1196, %v1612
  %v1977 = vadd.f32 %v1197, %v1616
  %v1978 = vadd.f32 %v1198, %v1620
  %v1979 = vadd.f32 %v1199, %v1624
  %v1980 = vadd.f32 %v1200, %v1628
  %v1981 = vadd.f32 %v1201, %v1632
  %v1982 = vadd.f32 %v1202, %v1636
  %v1983 = vadd.f32 %v1203, %v1640
  %v1984 = vadd.f32 %v1204, %v1644
  %v1985 = vadd.f32 %v1205, %v1648
  %v1986 = vadd.f32 %v1206, %v1652
  %v1987 = vadd.f32 %v1207, %v1656
  %v1988 = vadd.f32 %v1208, %v1660
  %v1989 = vadd.f32 %v1209, %v1664
  %v1990 = vadd.f32 %v1210, %v1668
  %v1991 = vadd.f32 %v1211, %v1672
  %v1992 = vadd.f32 %v1212, %v1676
  %v1993 = vadd.f32 %v1213, %v1680
  %v1994 = vadd.f32 %v1214, %v1684
  %v1995 = vadd.f32 %v1215, %v1688
  %v1996 = vadd.f32 %v1216, %v1692
  %v1997 = vadd.f32 %v1217, %v1696
  %v1998 = vadd.f32 %v1218, %v1700
  %v1999 = vadd.f32 %v1219, %v1704
  %v2000 = vadd.f32 %v1220, %v1708
  %v2001 = vadd.f32 %v1221, %v1712
  %v2002 = vadd.f32 %v1222, %v1716
  %v2003 = vadd.f32 %v1223, %v1720
  %v2004 = vadd.f32 %v1224, %v1724
  %v2005 = vadd.f32 %v1225, %v1728
  %v2006 = vadd.f32 %v1226, %v1732
  %v2007 = vadd.f32 %v1227, %v1736
  %v2008 = vadd.f32 %v1228, %v1740
  %v2009 = vadd.f32 %v1229, %v1744
  %v2010 = vadd.f32 %v1230, %v1748
  %v2011 = vadd.f32 %v1231, %v1752
  %v2012 = vadd.f32 %v1232, %v1756
  %v2013 = vadd.f32 %v1233, %v1760
  %v2014 = vadd.f32 %v1234, %v1764
  %v2015 = vadd.f32 %v1235, %v1768
  %v2016 = vadd.f32 %v1236, %v1772
  %v2017 = vadd.f32 %v1237, %v1776
  %v2018 = vadd.f32 %v1238, %v1780
  %v2019 = vadd.f32 %v1239, %v1784
  %v2020 = vadd.f32 %v1240, %v1788
  %v2021 = vadd.f32 %v1241, %v1792
  %v2022 = vadd.f32 %v1242, %v1796
  %v2023 = vadd.f32 %v1243, %v1800
  %v2024 = vadd.f32 %v1244, %v1804
  %v2025 = vadd.f32 %v1245, %v1808
  %v2026 = vadd.f32 %v1246, %v1812
  %v2027 = vadd.f32 %v1247, %v1816
  %v2028 = vadd.f32 %v1248, %v1820
  %v2029 = vadd.f32 %v1249, %v1824
  %v2030 = vadd.f32 %v1250, %v1828
  %v2031 = vadd.f32 %v1251, %v1832
  %v2032 = vadd.f32 %v1252, %v1836
  %v2033 = vadd.f32 %v1253, %v1840
  %v2034 = vadd.f32 %v1254, %v1844
  %v2035 = vadd.f32 %v1255, %v1848
  %v2036 = vadd.f32 %v1256, %v1852
  %v2037 = vadd.f32 %v1257, %v1856
  %v2038 = vadd.f32 %v1258, %v1860
  %v2039 = vadd.f32 %v1259, %v1864
  %v2040 = vadd.f32 %v1260, %v1868
  %v2041 = vadd.f32 %v1261, %v1872
  %v2042 = vadd.f32 %v1262, %v1876
  %v2043 = vadd.f32 %v1263, %v1880
  %v2044 = vadd.f32 %v1264, %v1884
  %v2045 = vadd.f32 %v1265, %v1888
  %v2046 = vmax.f32 %v1890, 0.0
  %v2047 = vmax.f32 %v1891, 0.0
  %v2048 = vmax.f32 %v1892, 0.0
  %v2049 = vmax.f32 %v1893, 0.0
  %v2050 = vmax.f32 %v1894, 0.0
  %v2051 = vmax.f32 %v1895, 0.0
  %v2052 = vmax.f32 %v1896, 0.0
  %v2053 = vmax.f32 %v1897, 0.0
  %v2054 = vmax.f32 %v1898, 0.0
  %v2055 = vmax.f32 %v1899, 0.0
  %v2056 = vmax.f32 %v1900, 0.0
  %v2057 = vmax.f32 %v1901, 0.0
  %v2058 = vmax.f32 %v1902, 0.0
  %v2059 = vmax.f32 %v1903, 0.0
  %v2060 = vmax.f32 %v1904, 0.0
  %v2061 = vmax.f32 %v1905, 0.0
  %v2062 = vmax.f32 %v1906, 0.0
  %v2063 = vmax.f32 %v1907, 0.0
  %v2064 = vmax.f32 %v1908, 0.0
  %v2065 = vmax.f32 %v1909, 0.0
  %v2066 = vmax.f32 %v1910, 0.0
  %v2067 = vmax.f32 %v1911, 0.0
  %v2068 = vmax.f32 %v1912, 0.0
  %v2069 = vmax.f32 %v1913, 0.0
  %v2070 = vmax.f32 %v1914, 0.0
  %v2071 = vmax.f32 %v1915, 0.0
  %v2072 = vmax.f32 %v1916, 0.0
  %v2073 = vmax.f32 %v1917, 0.0
  %v2074 = vmax.f32 %v1918, 0.0
  %v2075 = vmax.f32 %v1919, 0.0
  %v2076 = vmax.f32 %v1920, 0.0
  %v2077 = vmax.f32 %v1921, 0.0
  %v2078 = vmax.f32 %v1922, 0.0
  %v2079 = vmax.f32 %v1923, 0.0
  %v2080 = vmax.f32 %v1924, 0.0
  %v2081 = vmax.f32 %v1925, 0.0
  %v2082 = vmax.f32 %v1926, 0.0
  %v2083 = vmax.f32 %v1927, 0.0
  %v2084 = vmax.f32 %v1928, 0.0
  %v2085 = vmax.f32 %v1929, 0.0
  %v2086 = vmax.f32 %v1930, 0.0
  %v2087 = vmax.f32 %v1931, 0.0
  %v2088 = vmax.f32 %v1932, 0.0
  %v2089 = vmax.f32 %v1933, 0.0
  %v2090 = vmax.f32 %v1934, 0.0
  %v2091 = vmax.f32 %v1935, 0.0
  %v2092 = vmax.f32 %v1936, 0.0
  %v2093 = vmax.f32 %v1937, 0.0
  %v2094 = vmax.f32 %v1938, 0.0
  %v2095 = vmax.f32 %v1939, 0.0
  %v2096 = vmax.f32 %v1940, 0.0
  %v2097 = vmax.f32 %v1941, 0.0
  %v2098 = vmax.f32 %v1942, 0.0
  %v2099 = vmax.f32 %v1943, 0.0
  %v2100 = vmax.f32 %v1944, 0.0
  %v2101 = vmax.f32 %v1945, 0.0
  %v2102 = vmax.f32 %v1946, 0.0
  %v2103 = vmax.f32 %v1947, 0.0
  %v2104 = vmax.f32 %v1948, 0.0
  %v2105 = vmax.f32 %v1949, 0.0
  %v2106 = vmax.f32 %v1950, 0.0
  %v2107 = vmax.f32 %v1951, 0.0
  %v2108 = vmax.f32 %v1952, 0.0
  %v2109 = vmax.f32 %v1953, 0.0
  %v2110 = vmax.f32 %v1954, 0.0
  %v2111 = vmax.f32 %v1955, 0.0
  %v2112 = vmax.f32 %v1956, 0.0
  %v2113 = vmax.f32 %v1957, 0.0
  %v2114 = vmax.f32 %v1958, 0.0
  %v2115 = vmax.f32 %v1959, 0.0
  %v2116 = vmax.f32 %v1960, 0.0
  %v2117 = vmax.f32 %v1961, 0.0
  %v2118 = vmax.f32 %v1962, 0.0
  %v2119 = vmax.f32 %v1963, 0.0
  %v2120 = vmax.f32 %v1964, 0.0
  %v2121 = vmax.f32 %v1965, 0.0
  %v2122 = vmax.f32 %v1966, 0.0
  %v2123 = vmax.f32 %v1967, 0.0
  %v2124 = vmax.f32 %v1968, 0.0
  %v2125 = vmax.f32 %v1969, 0.0
  %v2126 = vmax.f32 %v1970, 0.0
  %v2127 = vmax.f32 %v1971, 0.0
  %v2128 = vmax.f32 %v1972, 0.0
  %v2129 = vmax.f32 %v1973, 0.0
  %v2130 = vmax.f32 %v1974, 0.0
  %v2131 = vmax.f32 %v1975, 0.0
  %v2132 = vmax.f32 %v1976, 0.0
  %v2133 = vmax.f32 %v1977, 0.0
  %v2134 = vmax.f32 %v1978, 0.0
  %v2135 = vmax.f32 %v1979, 0.0
  %v2136 = vmax.f32 %v1980, 0.0
  %v2137 = vmax.f32 %v1981, 0.0
  %v2138 = vmax.f32 %v1982, 0.0
  %v2139 = vmax.f32 %v1983, 0.0
  %v2140 = vmax.f32 %v1984, 0.0
  %v2141 = vmax.f32 %v1985, 0.0
  %v2142 = vmax.f32 %v1986, 0.0
  %v2143 = vmax.f32 %v1987, 0.0
  %v2144 = vmax.f32 %v1988, 0.0
  %v2145 = vmax.f32 %v1989, 0.0
  %v2146 = vmax.f32 %v1990, 0.0
  %v2147 = vmax.f32 %v1991, 0.0
  %v2148 = vmax.f32 %v1992, 0.0
  %v2149 = vmax.f32 %v1993, 0.0
  %v2150 = vmax.f32 %v1994, 0.0
  %v2151 = vmax.f32 %v1995, 0.0
  %v2152 = vmax.f32 %v1996, 0.0
  %v2153 = vmax.f32 %v1997, 0.0
  %v2154 = vmax.f32 %v1998, 0.0
  %v2155 = vmax.f32 %v1999, 0.0
  %v2156 = vmax.f32 %v2000, 0.0
  %v2157 = vmax.f32 %v2001, 0.0
  %v2158 = vmax.f32 %v2002, 0.0
  %v2159 = vmax.f32 %v2003, 0.0
  %v2160 = vmax.f32 %v2004, 0.0
  %v2161 = vmax.f32 %v2005, 0.0
  %v2162 = vmax.f32 %v2006, 0.0
  %v2163 = vmax.f32 %v2007, 0.0
  %v2164 = vmax.f32 %v2008, 0.0
  %v2165 = vmax.f32 %v2009, 0.0
  %v2166 = vmax.f32 %v2010, 0.0
  %v2167 = vmax.f32 %v2011, 0.0
  %v2168 = vmax.f32 %v2012, 0.0
  %v2169 = vmax.f32 %v2013, 0.0
  %v2170 = vmax.f32 %v2014, 0.0
  %v2171 = vmax.f32 %v2015, 0.0
  %v2172 = vmax.f32 %v2016, 0.0
  %v2173 = vmax.f32 %v2017, 0.0
  %v2174 = vmax.f32 %v2018, 0.0
  %v2175 = vmax.f32 %v2019, 0.0
  %v2176 = vmax.f32 %v2020, 0.0
  %v2177 = vmax.f32 %v2021, 0.0
  %v2178 = vmax.f32 %v2022, 0.0
  %v2179 = vmax.f32 %v2023, 0.0
  %v2180 = vmax.f32 %v2024, 0.0
  %v2181 = vmax.f32 %v2025, 0.0
  %v2182 = vmax.f32 %v2026, 0.0
  %v2183 = vmax.f32 %v2027, 0.0
  %v2184 = vmax.f32 %v2028, 0.0
  %v2185 = vmax.f32 %v2029, 0.0
  %v2186 = vmax.f32 %v2030, 0.0
  %v2187 = vmax.f32 %v2031, 0.0
  %v2188 = vmax.f32 %v2032, 0.0
  %v2189 = vmax.f32 %v2033, 0.0
  %v2190 = vmax.f32 %v2034, 0.0
  %v2191 = vmax.f32 %v2035, 0.0
  %v2192 = vmax.f32 %v2036, 0.0
  %v2193 = vmax.f32 %v2037, 0.0
  %v2194 = vmax.f32 %v2038, 0.0
  %v2195 = vmax.f32 %v2039, 0.0
  %v2196 = vmax.f32 %v2040, 0.0
  %v2197 = vmax.f32 %v2041, 0.0
  %v2198 = vmax.f32 %v2042, 0.0
  %v2199 = vmax.f32 %v2043, 0.0
  %v2200 = vmax.f32 %v2044, 0.0
  %v2201 = vmax.f32 %v2045, 0.0
  %v2202 = vld [vmem:[%s1] sm:$0xff]
  %v2203 = vld [vmem:[%s1 + $0x8] sm:$0xff]
  %v2204 = vld [vmem:[%s1 + $0x10] sm:$0xff]
  %v2205 = vld [vmem:[%s1 + $0x18] sm:$0xff]
  %v2206 = vld [vmem:[%s1 + $0x20] sm:$0xff]
  %v2207 = vld [vmem:[%s1 + $0x28] sm:$0xff]
  %v2208 = vld [vmem:[%s1 + $0x30] sm:$0xff]
  %v2209 = vld [vmem:[%s1 + $0x38] sm:$0xff]
  %v2210 = vld [vmem:[%s1 + $0x40] sm:$0xff]
  %v2211 = vld [vmem:[%s1 + $0x48] sm:$0xff]
  %v2212 = vld [vmem:[%s1 + $0x50] sm:$0xff]
  %v2213 = vld [vmem:[%s1 + $0x58] sm:$0xff]
  %v2214 = vld [vmem:[%s1 + $0x60] sm:$0xff]
  %v2215 = vld [vmem:[%s1 + $0x68] sm:$0xff]
  %v2216 = vld [vmem:[%s1 + $0x70] sm:$0xff]
  %v2217 = vld [vmem:[%s1 + $0x78] sm:$0xff]
  %v2218 = vld [vmem:[%s1 + $0x80] sm:$0xff]
  %v2219 = vld [vmem:[%s1 + $0x88] sm:$0xff]
  %v2220 = vld [vmem:[%s1 + $0x90] sm:$0xff]
  %v2221 = vld [vmem:[%s1 + $0x98] sm:$0xff]
  %v2222 = vld [vmem:[%s1 + $0xa0] sm:$0xff]
  %v2223 = vld [vmem:[%s1 + $0xa8] sm:$0xff]
  %v2224 = vld [vmem:[%s1 + $0xb0] sm:$0xff]
  %v2225 = vld [vmem:[%s1 + $0xb8] sm:$0xff]
  %v2226 = vld [vmem:[%s1 + $0xc0] sm:$0xff]
  %v2227 = vld [vmem:[%s1 + $0xc8] sm:$0xff]
  %v2228 = vld [vmem:[%s1 + $0xd0] sm:$0xff]
  %v2229 = vld [vmem:[%s1 + $0xd8] sm:$0xff]
  %v2230 = vld [vmem:[%s1 + $0xe0] sm:$0xff]
  %v2231 = vld [vmem:[%s1 + $0xe8] sm:$0xff]
  %v2232 = vld [vmem:[%s1 + $0xf0] sm:$0xff]
  %v2233 = vld [vmem:[%s1 + $0xf8] sm:$0xff]
  %v2234 = vld [vmem:[%s1 + $0x100] sm:$0xff]
  %v2235 = vld [vmem:[%s1 + $0x108] sm:$0xff]
  %v2236 = vld [vmem:[%s1 + $0x110] sm:$0xff]
  %v2237 = vld [vmem:[%s1 + $0x118] sm:$0xff]
  %v2238 = vld [vmem:[%s1 + $0x120] sm:$0xff]
  %v2239 = vld [vmem:[%s1 + $0x128] sm:$0xff]
  %v2240 = vld [vmem:[%s1 + $0x130] sm:$0xff]
  %v2241 = vld [vmem:[%s1 + $0x138] sm:$0xff]
  %v2242 = vld [vmem:[%s1 + $0x140] sm:$0xff]
  %v2243 = vld [vmem:[%s1 + $0x148] sm:$0xff]
  %v2244 = vld [vmem:[%s1 + $0x150] sm:$0xff]
  %v2245 = vld [vmem:[%s1 + $0x158] sm:$0xff]
  %v2246 = vld [vmem:[%s1 + $0x160] sm:$0xff]
  %v2247 = vld [vmem:[%s1 + $0x168] sm:$0xff]
  %v2248 = vld [vmem:[%s1 + $0x170] sm:$0xff]
  %v2249 = vld [vmem:[%s1 + $0x178] sm:$0xff]
  %v2250 = vld [vmem:[%s1 + $0x180] sm:$0xff]
  %v2251 = vld [vmem:[%s1 + $0x188] sm:$0xff]
  %v2252 = vld [vmem:[%s1 + $0x190] sm:$0xff]
  %v2253 = vld [vmem:[%s1 + $0x198] sm:$0xff]
  %v2254 = vld [vmem:[%s1 + $0x1a0] sm:$0xff]
  %v2255 = vld [vmem:[%s1 + $0x1a8] sm:$0xff]
  %v2256 = vld [vmem:[%s1 + $0x1b0] sm:$0xff]
  %v2257 = vld [vmem:[%s1 + $0x1b8] sm:$0xff]
  %v2258 = vld [vmem:[%s1 + $0x1c0] sm:$0xff]
  %v2259 = vld [vmem:[%s1 + $0x1c8] sm:$0xff]
  %v2260 = vld [vmem:[%s1 + $0x1d0] sm:$0xff]
  %v2261 = vld [vmem:[%s1 + $0x1d8] sm:$0xff]
  %v2262 = vld [vmem:[%s1 + $0x1e0] sm:$0xff]
  %v2263 = vld [vmem:[%s1 + $0x1e8] sm:$0xff]
  %v2264 = vld [vmem:[%s1 + $0x1f0] sm:$0xff]
  %v2265 = vld [vmem:[%s1 + $0x1f8] sm:$0xff]
  %v2266 = vld [vmem:[%s1 + $0x200] sm:$0xff]
  %v2267 = vld [vmem:[%s1 + $0x208] sm:$0xff]
  %v2268 = vld [vmem:[%s1 + $0x210] sm:$0xff]
  %v2269 = vld [vmem:[%s1 + $0x218] sm:$0xff]
  %v2270 = vld [vmem:[%s1 + $0x220] sm:$0xff]
  %v2271 = vld [vmem:[%s1 + $0x228] sm:$0xff]
  %v2272 = vld [vmem:[%s1 + $0x230] sm:$0xff]
  %v2273 = vld [vmem:[%s1 + $0x238] sm:$0xff]
  %v2274 = vld [vmem:[%s1 + $0x240] sm:$0xff]
  %v2275 = vld [vmem:[%s1 + $0x248] sm:$0xff]
  %v2276 = vld [vmem:[%s1 + $0x250] sm:$0xff]
  %v2277 = vld [vmem:[%s1 + $0x258] sm:$0xff]
  %v2278 = vld [vmem:[%s1 + $0x260] sm:$0xff]
  %v2279 = vld [vmem:[%s1 + $0x268] sm:$0xff]
  %v2280 = vld [vmem:[%s1 + $0x270] sm:$0xff]
  %v2281 = vld [vmem:[%s1 + $0x278] sm:$0xff]
  %v2282 = vpack.c.bf16 %v2047, %v2046
  %v2283 = vpack.c.bf16 %v2049, %v2048
  %v2284 = vpack.c.bf16 %v2051, %v2050
  %v2285 = vpack.c.bf16 %v2053, %v2052
  %v2286 = vpack.c.bf16 %v2055, %v2054
  %v2287 = vpack.c.bf16 %v2057, %v2056
  %v2288 = vpack.c.bf16 %v2059, %v2058
  %v2289 = vpack.c.bf16 %v2061, %v2060
  %v2290 = vpack.c.bf16 %v2063, %v2062
  %v2291 = vpack.c.bf16 %v2065, %v2064
  %v2292 = vpack.c.bf16 %v2067, %v2066
  %v2293 = vpack.c.bf16 %v2069, %v2068
  %v2294 = vpack.c.bf16 %v2071, %v2070
  %v2295 = vpack.c.bf16 %v2073, %v2072
  %v2296 = vpack.c.bf16 %v2075, %v2074
  %v2297 = vpack.c.bf16 %v2077, %v2076
  %v2298 = vpack.c.bf16 %v2079, %v2078
  %v2299 = vpack.c.bf16 %v2081, %v2080
  %v2300 = vpack.c.bf16 %v2083, %v2082
  %v2301 = vpack.c.bf16 %v2085, %v2084
  %v2302 = vpack.c.bf16 %v2087, %v2086
  %v2303 = vpack.c.bf16 %v2089, %v2088
  %v2304 = vpack.c.bf16 %v2091, %v2090
  %v2305 = vpack.c.bf16 %v2093, %v2092
  %v2306 = vpack.c.bf16 %v2095, %v2094
  %v2307 = vpack.c.bf16 %v2097, %v2096
  %v2308 = vpack.c.bf16 %v2099, %v2098
  %v2309 = vpack.c.bf16 %v2101, %v2100
  %v2310 = vpack.c.bf16 %v2103, %v2102
  %v2311 = vpack.c.bf16 %v2105, %v2104
  %v2312 = vpack.c.bf16 %v2107, %v2106
  %v2313 = vpack.c.bf16 %v2109, %v2108
  %v2314 = vpack.c.bf16 %v2111, %v2110
  %v2315 = vpack.c.bf16 %v2113, %v2112
  %v2316 = vpack.c.bf16 %v2115, %v2114
  %v2317 = vpack.c.bf16 %v2117, %v2116
  %v2318 = vpack.c.bf16 %v2119, %v2118
  %v2319 = vpack.c.bf16 %v2121, %v2120
  %v2320 = vpack.c.bf16 %v2123, %v2122
  %v2321 = vpack.c.bf16 %v2125, %v2124
  %v2322 = vpack.c.bf16 %v2127, %v2126
  %v2323 = vpack.c.bf16 %v2129, %v2128
  %v2324 = vpack.c.bf16 %v2131, %v2130
  %v2325 = vpack.c.bf16 %v2133, %v2132
  %v2326 = vpack.c.bf16 %v2135, %v2134
  %v2327 = vpack.c.bf16 %v2137, %v2136
  %v2328 = vpack.c.bf16 %v2139, %v2138
  %v2329 = vpack.c.bf16 %v2141, %v2140
  %v2330 = vpack.c.bf16 %v2143, %v2142
  %v2331 = vpack.c.bf16 %v2145, %v2144
  %v2332 = vpack.c.bf16 %v2147, %v2146
  %v2333 = vpack.c.bf16 %v2149, %v2148
  %v2334 = vpack.c.bf16 %v2151, %v2150
  %v2335 = vpack.c.bf16 %v2153, %v2152
  %v2336 = vpack.c.bf16 %v2155, %v2154
  %v2337 = vpack.c.bf16 %v2157, %v2156
  %v2338 = vpack.c.bf16 %v2159, %v2158
  %v2339 = vpack.c.bf16 %v2161, %v2160
  %v2340 = vpack.c.bf16 %v2163, %v2162
  %v2341 = vpack.c.bf16 %v2165, %v2164
  %v2342 = vpack.c.bf16 %v2167, %v2166
  %v2343 = vpack.c.bf16 %v2169, %v2168
  %v2344 = vpack.c.bf16 %v2171, %v2170
  %v2345 = vpack.c.bf16 %v2173, %v2172
  %v2346 = vpack.c.bf16 %v2175, %v2174
  %v2347 = vpack.c.bf16 %v2177, %v2176
  %v2348 = vpack.c.bf16 %v2179, %v2178
  %v2349 = vpack.c.bf16 %v2181, %v2180
  %v2350 = vpack.c.bf16 %v2183, %v2182
  %v2351 = vpack.c.bf16 %v2185, %v2184
  %v2352 = vpack.c.bf16 %v2187, %v2186
  %v2353 = vpack.c.bf16 %v2189, %v2188
  %v2354 = vpack.c.bf16 %v2191, %v2190
  %v2355 = vpack.c.bf16 %v2193, %v2192
  %v2356 = vpack.c.bf16 %v2195, %v2194
  %v2357 = vpack.c.bf16 %v2197, %v2196
  %v2358 = vpack.c.bf16 %v2199, %v2198
  %v2359 = vpack.c.bf16 %v2201, %v2200
  %v2440 = vunpack.c.l.b16 %v2202
  %v2441 = vunpack.c.h.b16 %v2202
  %v2442 = vunpack.c.l.b16 %v2203
  %v2443 = vunpack.c.h.b16 %v2203
  %v2444 = vunpack.c.l.b16 %v2204
  %v2445 = vunpack.c.h.b16 %v2204
  %v2446 = vunpack.c.l.b16 %v2205
  %v2447 = vunpack.c.h.b16 %v2205
  %v2448 = vunpack.c.l.b16 %v2206
  %v2449 = vunpack.c.h.b16 %v2206
  %v2450 = vunpack.c.l.b16 %v2207
  %v2451 = vunpack.c.h.b16 %v2207
  %v2452 = vunpack.c.l.b16 %v2208
  %v2453 = vunpack.c.h.b16 %v2208
  %v2454 = vunpack.c.l.b16 %v2209
  %v2455 = vunpack.c.h.b16 %v2209
  %v2456 = vunpack.c.l.b16 %v2210
  %v2457 = vunpack.c.h.b16 %v2210
  %v2458 = vunpack.c.l.b16 %v2211
  %v2459 = vunpack.c.h.b16 %v2211
  %v2460 = vunpack.c.l.b16 %v2212
  %v2461 = vunpack.c.h.b16 %v2212
  %v2462 = vunpack.c.l.b16 %v2213
  %v2463 = vunpack.c.h.b16 %v2213
  %v2464 = vunpack.c.l.b16 %v2214
  %v2465 = vunpack.c.h.b16 %v2214
  %v2466 = vunpack.c.l.b16 %v2215
  %v2467 = vunpack.c.h.b16 %v2215
  %v2468 = vunpack.c.l.b16 %v2216
  %v2469 = vunpack.c.h.b16 %v2216
  %v2470 = vunpack.c.l.b16 %v2217
  %v2471 = vunpack.c.h.b16 %v2217
  %v2472 = vunpack.c.l.b16 %v2218
  %v2473 = vunpack.c.h.b16 %v2218
  %v2474 = vunpack.c.l.b16 %v2219
  %v2475 = vunpack.c.h.b16 %v2219
  %v2476 = vunpack.c.l.b16 %v2220
  %v2477 = vunpack.c.h.b16 %v2220
  %v2478 = vunpack.c.l.b16 %v2221
  %v2479 = vunpack.c.h.b16 %v2221
  %v2480 = vunpack.c.l.b16 %v2222
  %v2481 = vunpack.c.h.b16 %v2222
  %v2482 = vunpack.c.l.b16 %v2223
  %v2483 = vunpack.c.h.b16 %v2223
  %v2484 = vunpack.c.l.b16 %v2224
  %v2485 = vunpack.c.h.b16 %v2224
  %v2486 = vunpack.c.l.b16 %v2225
  %v2487 = vunpack.c.h.b16 %v2225
  %v2488 = vunpack.c.l.b16 %v2226
  %v2489 = vunpack.c.h.b16 %v2226
  %v2490 = vunpack.c.l.b16 %v2227
  %v2491 = vunpack.c.h.b16 %v2227
  %v2492 = vunpack.c.l.b16 %v2228
  %v2493 = vunpack.c.h.b16 %v2228
  %v2494 = vunpack.c.l.b16 %v2229
  %v2495 = vunpack.c.h.b16 %v2229
  %v2496 = vunpack.c.l.b16 %v2230
  %v2497 = vunpack.c.h.b16 %v2230
  %v2498 = vunpack.c.l.b16 %v2231
  %v2499 = vunpack.c.h.b16 %v2231
  %v2500 = vunpack.c.l.b16 %v2232
  %v2501 = vunpack.c.h.b16 %v2232
  %v2502 = vunpack.c.l.b16 %v2233
  %v2503 = vunpack.c.h.b16 %v2233
  %v2504 = vunpack.c.l.b16 %v2234
  %v2505 = vunpack.c.h.b16 %v2234
  %v2506 = vunpack.c.l.b16 %v2235
  %v2507 = vunpack.c.h.b16 %v2235
  %v2508 = vunpack.c.l.b16 %v2236
  %v2509 = vunpack.c.h.b16 %v2236
  %v2510 = vunpack.c.l.b16 %v2237
  %v2511 = vunpack.c.h.b16 %v2237
  %v2512 = vunpack.c.l.b16 %v2238
  %v2513 = vunpack.c.h.b16 %v2238
  %v2514 = vunpack.c.l.b16 %v2239
  %v2515 = vunpack.c.h.b16 %v2239
  %v2516 = vunpack.c.l.b16 %v2240
  %v2517 = vunpack.c.h.b16 %v2240
  %v2518 = vunpack.c.l.b16 %v2241
  %v2519 = vunpack.c.h.b16 %v2241
  %v2520 = vunpack.c.l.b16 %v2242
  %v2521 = vunpack.c.h.b16 %v2242
  %v2522 = vunpack.c.l.b16 %v2243
  %v2523 = vunpack.c.h.b16 %v2243
  %v2524 = vunpack.c.l.b16 %v2244
  %v2525 = vunpack.c.h.b16 %v2244
  %v2526 = vunpack.c.l.b16 %v2245
  %v2527 = vunpack.c.h.b16 %v2245
  %v2528 = vunpack.c.l.b16 %v2246
  %v2529 = vunpack.c.h.b16 %v2246
  %v2530 = vunpack.c.l.b16 %v2247
  %v2531 = vunpack.c.h.b16 %v2247
  %v2532 = vunpack.c.l.b16 %v2248
  %v2533 = vunpack.c.h.b16 %v2248
  %v2534 = vunpack.c.l.b16 %v2249
  %v2535 = vunpack.c.h.b16 %v2249
  %v2536 = vunpack.c.l.b16 %v2250
  %v2537 = vunpack.c.h.b16 %v2250
  %v2538 = vunpack.c.l.b16 %v2251
  %v2539 = vunpack.c.h.b16 %v2251
  %v2540 = vunpack.c.l.b16 %v2252
  %v2541 = vunpack.c.h.b16 %v2252
  %v2542 = vunpack.c.l.b16 %v2253
  %v2543 = vunpack.c.h.b16 %v2253
  %v2544 = vunpack.c.l.b16 %v2254
  %v2545 = vunpack.c.h.b16 %v2254
  %v2546 = vunpack.c.l.b16 %v2255
  %v2547 = vunpack.c.h.b16 %v2255
  %v2548 = vunpack.c.l.b16 %v2256
  %v2549 = vunpack.c.h.b16 %v2256
  %v2550 = vunpack.c.l.b16 %v2257
  %v2551 = vunpack.c.h.b16 %v2257
  %v2552 = vunpack.c.l.b16 %v2258
  %v2553 = vunpack.c.h.b16 %v2258
  %v2554 = vunpack.c.l.b16 %v2259
  %v2555 = vunpack.c.h.b16 %v2259
  %v2556 = vunpack.c.l.b16 %v2260
  %v2557 = vunpack.c.h.b16 %v2260
  %v2558 = vunpack.c.l.b16 %v2261
  %v2559 = vunpack.c.h.b16 %v2261
  %v2560 = vunpack.c.l.b16 %v2262
  %v2561 = vunpack.c.h.b16 %v2262
  %v2562 = vunpack.c.l.b16 %v2263
  %v2563 = vunpack.c.h.b16 %v2263
  %v2564 = vunpack.c.l.b16 %v2264
  %v2565 = vunpack.c.h.b16 %v2264
  %v2566 = vunpack.c.l.b16 %v2265
  %v2567 = vunpack.c.h.b16 %v2265
  %v2568 = vunpack.c.l.b16 %v2266
  %v2569 = vunpack.c.h.b16 %v2266
  %v2570 = vunpack.c.l.b16 %v2267
  %v2571 = vunpack.c.h.b16 %v2267
  %v2572 = vunpack.c.l.b16 %v2268
  %v2573 = vunpack.c.h.b16 %v2268
  %v2574 = vunpack.c.l.b16 %v2269
  %v2575 = vunpack.c.h.b16 %v2269
  %v2576 = vunpack.c.l.b16 %v2270
  %v2577 = vunpack.c.h.b16 %v2270
  %v2578 = vunpack.c.l.b16 %v2271
  %v2579 = vunpack.c.h.b16 %v2271
  %v2580 = vunpack.c.l.b16 %v2272
  %v2581 = vunpack.c.h.b16 %v2272
  %v2582 = vunpack.c.l.b16 %v2273
  %v2583 = vunpack.c.h.b16 %v2273
  %v2584 = vunpack.c.l.b16 %v2274
  %v2585 = vunpack.c.h.b16 %v2274
  %v2586 = vunpack.c.l.b16 %v2275
  %v2587 = vunpack.c.h.b16 %v2275
  %v2588 = vunpack.c.l.b16 %v2276
  %v2589 = vunpack.c.h.b16 %v2276
  %v2590 = vunpack.c.l.b16 %v2277
  %v2591 = vunpack.c.h.b16 %v2277
  %v2592 = vunpack.c.l.b16 %v2278
  %v2593 = vunpack.c.h.b16 %v2278
  %v2594 = vunpack.c.l.b16 %v2279
  %v2595 = vunpack.c.h.b16 %v2279
  %v2596 = vunpack.c.l.b16 %v2280
  %v2597 = vunpack.c.h.b16 %v2280
  %v2598 = vunpack.c.l.b16 %v2281
  %v2599 = vunpack.c.h.b16 %v2281
  %v2600 = vpack.c.b16 %v2450, %v2440
  %v2601 = vpack.c.b16 %v2451, %v2441
  %v2602 = vpack.c.b16 %v2452, %v2442
  %v2603 = vpack.c.b16 %v2453, %v2443
  %v2604 = vpack.c.b16 %v2454, %v2444
  %v2605 = vpack.c.b16 %v2455, %v2445
  %v2606 = vpack.c.b16 %v2456, %v2446
  %v2607 = vpack.c.b16 %v2457, %v2447
  %v2608 = vpack.c.b16 %v2458, %v2448
  %v2609 = vpack.c.b16 %v2459, %v2449
  %v2610 = vpack.c.b16 %v2470, %v2460
  %v2611 = vpack.c.b16 %v2471, %v2461
  %v2612 = vpack.c.b16 %v2472, %v2462
  %v2613 = vpack.c.b16 %v2473, %v2463
  %v2614 = vpack.c.b16 %v2474, %v2464
  %v2615 = vpack.c.b16 %v2475, %v2465
  %v2616 = vpack.c.b16 %v2476, %v2466
  %v2617 = vpack.c.b16 %v2477, %v2467
  %v2618 = vpack.c.b16 %v2478, %v2468
  %v2619 = vpack.c.b16 %v2479, %v2469
  %v2620 = vpack.c.b16 %v2490, %v2480
  %v2621 = vpack.c.b16 %v2491, %v2481
  %v2622 = vpack.c.b16 %v2492, %v2482
  %v2623 = vpack.c.b16 %v2493, %v2483
  %v2624 = vpack.c.b16 %v2494, %v2484
  %v2625 = vpack.c.b16 %v2495, %v2485
  %v2626 = vpack.c.b16 %v2496, %v2486
  %v2627 = vpack.c.b16 %v2497, %v2487
  %v2628 = vpack.c.b16 %v2498, %v2488
  %v2629 = vpack.c.b16 %v2499, %v2489
  %v2630 = vpack.c.b16 %v2510, %v2500
  %v2631 = vpack.c.b16 %v2511, %v2501
  %v2632 = vpack.c.b16 %v2512, %v2502
  %v2633 = vpack.c.b16 %v2513, %v2503
  %v2634 = vpack.c.b16 %v2514, %v2504
  %v2635 = vpack.c.b16 %v2515, %v2505
  %v2636 = vpack.c.b16 %v2516, %v2506
  %v2637 = vpack.c.b16 %v2517, %v2507
  %v2638 = vpack.c.b16 %v2518, %v2508
  %v2639 = vpack.c.b16 %v2519, %v2509
  %v2640 = vpack.c.b16 %v2530, %v2520
  %v2641 = vpack.c.b16 %v2531, %v2521
  %v2642 = vpack.c.b16 %v2532, %v2522
  %v2643 = vpack.c.b16 %v2533, %v2523
  %v2644 = vpack.c.b16 %v2534, %v2524
  %v2645 = vpack.c.b16 %v2535, %v2525
  %v2646 = vpack.c.b16 %v2536, %v2526
  %v2647 = vpack.c.b16 %v2537, %v2527
  %v2648 = vpack.c.b16 %v2538, %v2528
  %v2649 = vpack.c.b16 %v2539, %v2529
  %v2650 = vpack.c.b16 %v2550, %v2540
  %v2651 = vpack.c.b16 %v2551, %v2541
  %v2652 = vpack.c.b16 %v2552, %v2542
  %v2653 = vpack.c.b16 %v2553, %v2543
  %v2654 = vpack.c.b16 %v2554, %v2544
  %v2655 = vpack.c.b16 %v2555, %v2545
  %v2656 = vpack.c.b16 %v2556, %v2546
  %v2657 = vpack.c.b16 %v2557, %v2547
  %v2658 = vpack.c.b16 %v2558, %v2548
  %v2659 = vpack.c.b16 %v2559, %v2549
  %v2660 = vpack.c.b16 %v2570, %v2560
  %v2661 = vpack.c.b16 %v2571, %v2561
  %v2662 = vpack.c.b16 %v2572, %v2562
  %v2663 = vpack.c.b16 %v2573, %v2563
  %v2664 = vpack.c.b16 %v2574, %v2564
  %v2665 = vpack.c.b16 %v2575, %v2565
  %v2666 = vpack.c.b16 %v2576, %v2566
  %v2667 = vpack.c.b16 %v2577, %v2567
  %v2668 = vpack.c.b16 %v2578, %v2568
  %v2669 = vpack.c.b16 %v2579, %v2569
  %v2670 = vpack.c.b16 %v2590, %v2580
  %v2671 = vpack.c.b16 %v2591, %v2581
  %v2672 = vpack.c.b16 %v2592, %v2582
  %v2673 = vpack.c.b16 %v2593, %v2583
  %v2674 = vpack.c.b16 %v2594, %v2584
  %v2675 = vpack.c.b16 %v2595, %v2585
  %v2676 = vpack.c.b16 %v2596, %v2586
  %v2677 = vpack.c.b16 %v2597, %v2587
  %v2678 = vpack.c.b16 %v2598, %v2588
  %v2679 = vpack.c.b16 %v2599, %v2589
  %vm2752 = vcmask 785408
  %v2754 = vsel %vm2752, %v2609, 0
  %v2757 = vsel %vm2752, %v2619, 0
  %v2760 = vsel %vm2752, %v2629, 0
  %v2763 = vsel %vm2752, %v2639, 0
  %v2766 = vsel %vm2752, %v2649, 0
  %v2769 = vsel %vm2752, %v2659, 0
  %v2772 = vsel %vm2752, %v2669, 0
  %v2775 = vsel %vm2752, %v2679, 0
  %2777 = vmatprep.subr.bf16.mxu0 0
  %2778 = vmatpush1.bf16.msra.mxu0 %v2289
  %2779 = vmatprep.subr.bf16.mxu0 0
  %2780 = vmatpush1.bf16.msra.mxu0 %v2288
  %2781 = vmatprep.subr.bf16.mxu0 0
  %2782 = vmatpush1.bf16.msra.mxu0 %v2287
  %2783 = vmatprep.subr.bf16.mxu0 0
  %2784 = vmatpush1.bf16.msra.mxu0 %v2286
  %2785 = vmatprep.subr.bf16.mxu0 0
  %2786 = vmatpush1.bf16.msra.mxu0 %v2285
  %2787 = vmatprep.subr.bf16.mxu0 0
  %2788 = vmatpush1.bf16.msra.mxu0 %v2284
  %2789 = vmatprep.subr.bf16.mxu0 0
  %2790 = vmatpush1.bf16.msra.mxu0 %v2283
  %2791 = vmatprep.subr.bf16.mxu0 0
  %2792 = vmatpush1.bf16.msra.mxu0 %v2282
  %2793 = vmatprep.subr.bf16.mxu0 0
  %2794 = vmatpush2.bf16.msra.mxu0 %v2297
  %2795 = vmatprep.subr.bf16.mxu0 0
  %2796 = vmatpush2.bf16.msra.mxu0 %v2296
  %2797 = vmatprep.subr.bf16.mxu0 0
  %2798 = vmatpush2.bf16.msra.mxu0 %v2295
  %2799 = vmatprep.subr.bf16.mxu0 0
  %2800 = vmatpush2.bf16.msra.mxu0 %v2294
  %2801 = vmatprep.subr.bf16.mxu0 0
  %2802 = vmatpush2.bf16.msra.mxu0 %v2293
  %2803 = vmatprep.subr.bf16.mxu0 0
  %2804 = vmatpush2.bf16.msra.mxu0 %v2292
  %2805 = vmatprep.subr.bf16.mxu0 0
  %2806 = vmatpush2.bf16.msra.mxu0 %v2291
  %2807 = vmatprep.subr.bf16.mxu0 0
  %2808 = vmatpush2.bf16.msra.mxu0 %v2290
  %2809 = vmatprep.mubr.bf16.mxu0 %v2601
  %2810 = vmatmul.mubr.bf16.gmra.mxu0 %v2600
  %v2811 = vpop.f32.mrf.mxu0
  %v2812 = vadd.f32 0.0, %v2811
  %v2813 = vpop.f32.mrf.mxu0
  %v2814 = vpop.f32.mrf.mxu0
  %v2815 = vadd.f32 0.0, %v2814
  %v2816 = vpop.f32.mrf.mxu0
  %2817 = vmatprep.mubr.bf16.mxu0 %v2611
  %2818 = vmatmul.mubr.bf16.gmra.mxu0 %v2610
  %v2819 = vpop.f32.mrf.mxu0
  %v2820 = vadd.f32 0.0, %v2819
  %v2821 = vpop.f32.mrf.mxu0
  %v2822 = vpop.f32.mrf.mxu0
  %v2823 = vadd.f32 0.0, %v2822
  %v2824 = vpop.f32.mrf.mxu0
  %2825 = vmatprep.mubr.bf16.mxu0 %v2621
  %2826 = vmatmul.mubr.bf16.gmra.mxu0 %v2620
  %v2827 = vpop.f32.mrf.mxu0
  %v2828 = vadd.f32 0.0, %v2827
  %v2829 = vpop.f32.mrf.mxu0
  %v2830 = vpop.f32.mrf.mxu0
  %v2831 = vadd.f32 0.0, %v2830
  %v2832 = vpop.f32.mrf.mxu0
  %2833 = vmatprep.mubr.bf16.mxu0 %v2631
  %2834 = vmatmul.mubr.bf16.gmra.mxu0 %v2630
  %v2835 = vpop.f32.mrf.mxu0
  %v2836 = vadd.f32 0.0, %v2835
  %v2837 = vpop.f32.mrf.mxu0
  %v2838 = vpop.f32.mrf.mxu0
  %v2839 = vadd.f32 0.0, %v2838
  %v2840 = vpop.f32.mrf.mxu0
  %2841 = vmatprep.mubr.bf16.mxu0 %v2641
  %2842 = vmatmul.mubr.bf16.gmra.mxu0 %v2640
  %v2843 = vpop.f32.mrf.mxu0
  %v2844 = vadd.f32 0.0, %v2843
  %v2845 = vpop.f32.mrf.mxu0
  %v2846 = vpop.f32.mrf.mxu0
  %v2847 = vadd.f32 0.0, %v2846
  %v2848 = vpop.f32.mrf.mxu0
  %2849 = vmatprep.mubr.bf16.mxu0 %v2651
  %2850 = vmatmul.mubr.bf16.gmra.mxu0 %v2650
  %v2851 = vpop.f32.mrf.mxu0
  %v2852 = vadd.f32 0.0, %v2851
  %v2853 = vpop.f32.mrf.mxu0
  %v2854 = vpop.f32.mrf.mxu0
  %v2855 = vadd.f32 0.0, %v2854
  %v2856 = vpop.f32.mrf.mxu0
  %2857 = vmatprep.mubr.bf16.mxu0 %v2661
  %2858 = vmatmul.mubr.bf16.gmra.mxu0 %v2660
  %v2859 = vpop.f32.mrf.mxu0
  %v2860 = vadd.f32 0.0, %v2859
  %v2861 = vpop.f32.mrf.mxu0
  %v2862 = vpop.f32.mrf.mxu0
  %v2863 = vadd.f32 0.0, %v2862
  %v2864 = vpop.f32.mrf.mxu0
  %2865 = vmatprep.mubr.bf16.mxu0 %v2671
  %2866 = vmatmul.mubr.bf16.gmra.mxu0 %v2670
  %v2867 = vpop.f32.mrf.mxu0
  %v2868 = vadd.f32 0.0, %v2867
  %v2869 = vpop.f32.mrf.mxu0
  %v2870 = vpop.f32.mrf.mxu0
  %v2871 = vadd.f32 0.0, %v2870
  %v2872 = vpop.f32.mrf.mxu0
  %2873 = vdwg.mxu0
  %2874 = vmatprep.subr.bf16.mxu0 0
  %2875 = vmatpush1.bf16.msra.mxu0 %v2305
  %2876 = vmatprep.subr.bf16.mxu0 0
  %2877 = vmatpush1.bf16.msra.mxu0 %v2304
  %2878 = vmatprep.subr.bf16.mxu0 0
  %2879 = vmatpush1.bf16.msra.mxu0 %v2303
  %2880 = vmatprep.subr.bf16.mxu0 0
  %2881 = vmatpush1.bf16.msra.mxu0 %v2302
  %2882 = vmatprep.subr.bf16.mxu0 0
  %2883 = vmatpush1.bf16.msra.mxu0 %v2301
  %2884 = vmatprep.subr.bf16.mxu0 0
  %2885 = vmatpush1.bf16.msra.mxu0 %v2300
  %2886 = vmatprep.subr.bf16.mxu0 0
  %2887 = vmatpush1.bf16.msra.mxu0 %v2299
  %2888 = vmatprep.subr.bf16.mxu0 0
  %2889 = vmatpush1.bf16.msra.mxu0 %v2298
  %2890 = vmatprep.subr.bf16.mxu0 0
  %2891 = vmatpush2.bf16.msra.mxu0 %v2313
  %2892 = vmatprep.subr.bf16.mxu0 0
  %2893 = vmatpush2.bf16.msra.mxu0 %v2312
  %2894 = vmatprep.subr.bf16.mxu0 0
  %2895 = vmatpush2.bf16.msra.mxu0 %v2311
  %2896 = vmatprep.subr.bf16.mxu0 0
  %2897 = vmatpush2.bf16.msra.mxu0 %v2310
  %2898 = vmatprep.subr.bf16.mxu0 0
  %2899 = vmatpush2.bf16.msra.mxu0 %v2309
  %2900 = vmatprep.subr.bf16.mxu0 0
  %2901 = vmatpush2.bf16.msra.mxu0 %v2308
  %2902 = vmatprep.subr.bf16.mxu0 0
  %2903 = vmatpush2.bf16.msra.mxu0 %v2307
  %2904 = vmatprep.subr.bf16.mxu0 0
  %2905 = vmatpush2.bf16.msra.mxu0 %v2306
  %2906 = vmatprep.mubr.bf16.mxu0 %v2603
  %2907 = vmatmul.mubr.bf16.gmra.mxu0 %v2602
  %v2908 = vpop.f32.mrf.mxu0
  %v2909 = vadd.f32 %v2812, %v2908
  %v2910 = vpop.f32.mrf.mxu0
  %v2911 = vpop.f32.mrf.mxu0
  %v2912 = vadd.f32 %v2815, %v2911
  %v2913 = vpop.f32.mrf.mxu0
  %2914 = vmatprep.mubr.bf16.mxu0 %v2613
  %2915 = vmatmul.mubr.bf16.gmra.mxu0 %v2612
  %v2916 = vpop.f32.mrf.mxu0
  %v2917 = vadd.f32 %v2820, %v2916
  %v2918 = vpop.f32.mrf.mxu0
  %v2919 = vpop.f32.mrf.mxu0
  %v2920 = vadd.f32 %v2823, %v2919
  %v2921 = vpop.f32.mrf.mxu0
  %2922 = vmatprep.mubr.bf16.mxu0 %v2623
  %2923 = vmatmul.mubr.bf16.gmra.mxu0 %v2622
  %v2924 = vpop.f32.mrf.mxu0
  %v2925 = vadd.f32 %v2828, %v2924
  %v2926 = vpop.f32.mrf.mxu0
  %v2927 = vpop.f32.mrf.mxu0
  %v2928 = vadd.f32 %v2831, %v2927
  %v2929 = vpop.f32.mrf.mxu0
  %2930 = vmatprep.mubr.bf16.mxu0 %v2633
  %2931 = vmatmul.mubr.bf16.gmra.mxu0 %v2632
  %v2932 = vpop.f32.mrf.mxu0
  %v2933 = vadd.f32 %v2836, %v2932
  %v2934 = vpop.f32.mrf.mxu0
  %v2935 = vpop.f32.mrf.mxu0
  %v2936 = vadd.f32 %v2839, %v2935
  %v2937 = vpop.f32.mrf.mxu0
  %2938 = vmatprep.mubr.bf16.mxu0 %v2643
  %2939 = vmatmul.mubr.bf16.gmra.mxu0 %v2642
  %v2940 = vpop.f32.mrf.mxu0
  %v2941 = vadd.f32 %v2844, %v2940
  %v2942 = vpop.f32.mrf.mxu0
  %v2943 = vpop.f32.mrf.mxu0
  %v2944 = vadd.f32 %v2847, %v2943
  %v2945 = vpop.f32.mrf.mxu0
  %2946 = vmatprep.mubr.bf16.mxu0 %v2653
  %2947 = vmatmul.mubr.bf16.gmra.mxu0 %v2652
  %v2948 = vpop.f32.mrf.mxu0
  %v2949 = vadd.f32 %v2852, %v2948
  %v2950 = vpop.f32.mrf.mxu0
  %v2951 = vpop.f32.mrf.mxu0
  %v2952 = vadd.f32 %v2855, %v2951
  %v2953 = vpop.f32.mrf.mxu0
  %2954 = vmatprep.mubr.bf16.mxu0 %v2663
  %2955 = vmatmul.mubr.bf16.gmra.mxu0 %v2662
  %v2956 = vpop.f32.mrf.mxu0
  %v2957 = vadd.f32 %v2860, %v2956
  %v2958 = vpop.f32.mrf.mxu0
  %v2959 = vpop.f32.mrf.mxu0
  %v2960 = vadd.f32 %v2863, %v2959
  %v2961 = vpop.f32.mrf.mxu0
  %2962 = vmatprep.mubr.bf16.mxu0 %v2673
  %2963 = vmatmul.mubr.bf16.gmra.mxu0 %v2672
  %v2964 = vpop.f32.mrf.mxu0
  %v2965 = vadd.f32 %v2868, %v2964
  %v2966 = vpop.f32.mrf.mxu0
  %v2967 = vpop.f32.mrf.mxu0
  %v2968 = vadd.f32 %v2871, %v2967
  %v2969 = vpop.f32.mrf.mxu0
  %2970 = vdwg.mxu0
  %2971 = vmatprep.subr.bf16.mxu0 0
  %2972 = vmatpush1.bf16.msra.mxu0 %v2321
  %2973 = vmatprep.subr.bf16.mxu0 0
  %2974 = vmatpush1.bf16.msra.mxu0 %v2320
  %2975 = vmatprep.subr.bf16.mxu0 0
  %2976 = vmatpush1.bf16.msra.mxu0 %v2319
  %2977 = vmatprep.subr.bf16.mxu0 0
  %2978 = vmatpush1.bf16.msra.mxu0 %v2318
  %2979 = vmatprep.subr.bf16.mxu0 0
  %2980 = vmatpush1.bf16.msra.mxu0 %v2317
  %2981 = vmatprep.subr.bf16.mxu0 0
  %2982 = vmatpush1.bf16.msra.mxu0 %v2316
  %2983 = vmatprep.subr.bf16.mxu0 0
  %2984 = vmatpush1.bf16.msra.mxu0 %v2315
  %2985 = vmatprep.subr.bf16.mxu0 0
  %2986 = vmatpush1.bf16.msra.mxu0 %v2314
  %2987 = vmatprep.subr.bf16.mxu0 0
  %2988 = vmatpush2.bf16.msra.mxu0 %v2329
  %2989 = vmatprep.subr.bf16.mxu0 0
  %2990 = vmatpush2.bf16.msra.mxu0 %v2328
  %2991 = vmatprep.subr.bf16.mxu0 0
  %2992 = vmatpush2.bf16.msra.mxu0 %v2327
  %2993 = vmatprep.subr.bf16.mxu0 0
  %2994 = vmatpush2.bf16.msra.mxu0 %v2326
  %2995 = vmatprep.subr.bf16.mxu0 0
  %2996 = vmatpush2.bf16.msra.mxu0 %v2325
  %2997 = vmatprep.subr.bf16.mxu0 0
  %2998 = vmatpush2.bf16.msra.mxu0 %v2324
  %2999 = vmatprep.subr.bf16.mxu0 0
  %3000 = vmatpush2.bf16.msra.mxu0 %v2323
  %3001 = vmatprep.subr.bf16.mxu0 0
  %3002 = vmatpush2.bf16.msra.mxu0 %v2322
  %3003 = vmatprep.mubr.bf16.mxu0 %v2605
  %3004 = vmatmul.mubr.bf16.gmra.mxu0 %v2604
  %v3005 = vpop.f32.mrf.mxu0
  %v3006 = vadd.f32 %v2909, %v3005
  %v3007 = vpop.f32.mrf.mxu0
  %v3008 = vpop.f32.mrf.mxu0
  %v3009 = vadd.f32 %v2912, %v3008
  %v3010 = vpop.f32.mrf.mxu0
  %3011 = vmatprep.mubr.bf16.mxu0 %v2615
  %3012 = vmatmul.mubr.bf16.gmra.mxu0 %v2614
  %v3013 = vpop.f32.mrf.mxu0
  %v3014 = vadd.f32 %v2917, %v3013
  %v3015 = vpop.f32.mrf.mxu0
  %v3016 = vpop.f32.mrf.mxu0
  %v3017 = vadd.f32 %v2920, %v3016
  %v3018 = vpop.f32.mrf.mxu0
  %3019 = vmatprep.mubr.bf16.mxu0 %v2625
  %3020 = vmatmul.mubr.bf16.gmra.mxu0 %v2624
  %v3021 = vpop.f32.mrf.mxu0
  %v3022 = vadd.f32 %v2925, %v3021
  %v3023 = vpop.f32.mrf.mxu0
  %v3024 = vpop.f32.mrf.mxu0
  %v3025 = vadd.f32 %v2928, %v3024
  %v3026 = vpop.f32.mrf.mxu0
  %3027 = vmatprep.mubr.bf16.mxu0 %v2635
  %3028 = vmatmul.mubr.bf16.gmra.mxu0 %v2634
  %v3029 = vpop.f32.mrf.mxu0
  %v3030 = vadd.f32 %v2933, %v3029
  %v3031 = vpop.f32.mrf.mxu0
  %v3032 = vpop.f32.mrf.mxu0
  %v3033 = vadd.f32 %v2936, %v3032
  %v3034 = vpop.f32.mrf.mxu0
  %3035 = vmatprep.mubr.bf16.mxu0 %v2645
  %3036 = vmatmul.mubr.bf16.gmra.mxu0 %v2644
  %v3037 = vpop.f32.mrf.mxu0
  %v3038 = vadd.f32 %v2941, %v3037
  %v3039 = vpop.f32.mrf.mxu0
  %v3040 = vpop.f32.mrf.mxu0
  %v3041 = vadd.f32 %v2944, %v3040
  %v3042 = vpop.f32.mrf.mxu0
  %3043 = vmatprep.mubr.bf16.mxu0 %v2655
  %3044 = vmatmul.mubr.bf16.gmra.mxu0 %v2654
  %v3045 = vpop.f32.mrf.mxu0
  %v3046 = vadd.f32 %v2949, %v3045
  %v3047 = vpop.f32.mrf.mxu0
  %v3048 = vpop.f32.mrf.mxu0
  %v3049 = vadd.f32 %v2952, %v3048
  %v3050 = vpop.f32.mrf.mxu0
  %3051 = vmatprep.mubr.bf16.mxu0 %v2665
  %3052 = vmatmul.mubr.bf16.gmra.mxu0 %v2664
  %v3053 = vpop.f32.mrf.mxu0
  %v3054 = vadd.f32 %v2957, %v3053
  %v3055 = vpop.f32.mrf.mxu0
  %v3056 = vpop.f32.mrf.mxu0
  %v3057 = vadd.f32 %v2960, %v3056
  %v3058 = vpop.f32.mrf.mxu0
  %3059 = vmatprep.mubr.bf16.mxu0 %v2675
  %3060 = vmatmul.mubr.bf16.gmra.mxu0 %v2674
  %v3061 = vpop.f32.mrf.mxu0
  %v3062 = vadd.f32 %v2965, %v3061
  %v3063 = vpop.f32.mrf.mxu0
  %v3064 = vpop.f32.mrf.mxu0
  %v3065 = vadd.f32 %v2968, %v3064
  %v3066 = vpop.f32.mrf.mxu0
  %3067 = vdwg.mxu0
  %3068 = vmatprep.subr.bf16.mxu0 0
  %3069 = vmatpush1.bf16.msra.mxu0 %v2337
  %3070 = vmatprep.subr.bf16.mxu0 0
  %3071 = vmatpush1.bf16.msra.mxu0 %v2336
  %3072 = vmatprep.subr.bf16.mxu0 0
  %3073 = vmatpush1.bf16.msra.mxu0 %v2335
  %3074 = vmatprep.subr.bf16.mxu0 0
  %3075 = vmatpush1.bf16.msra.mxu0 %v2334
  %3076 = vmatprep.subr.bf16.mxu0 0
  %3077 = vmatpush1.bf16.msra.mxu0 %v2333
  %3078 = vmatprep.subr.bf16.mxu0 0
  %3079 = vmatpush1.bf16.msra.mxu0 %v2332
  %3080 = vmatprep.subr.bf16.mxu0 0
  %3081 = vmatpush1.bf16.msra.mxu0 %v2331
  %3082 = vmatprep.subr.bf16.mxu0 0
  %3083 = vmatpush1.bf16.msra.mxu0 %v2330
  %3084 = vmatprep.subr.bf16.mxu0 0
  %3085 = vmatpush2.bf16.msra.mxu0 %v2345
  %3086 = vmatprep.subr.bf16.mxu0 0
  %3087 = vmatpush2.bf16.msra.mxu0 %v2344
  %3088 = vmatprep.subr.bf16.mxu0 0
  %3089 = vmatpush2.bf16.msra.mxu0 %v2343
  %3090 = vmatprep.subr.bf16.mxu0 0
  %3091 = vmatpush2.bf16.msra.mxu0 %v2342
  %3092 = vmatprep.subr.bf16.mxu0 0
  %3093 = vmatpush2.bf16.msra.mxu0 %v2341
  %3094 = vmatprep.subr.bf16.mxu0 0
  %3095 = vmatpush2.bf16.msra.mxu0 %v2340
  %3096 = vmatprep.subr.bf16.mxu0 0
  %3097 = vmatpush2.bf16.msra.mxu0 %v2339
  %3098 = vmatprep.subr.bf16.mxu0 0
  %3099 = vmatpush2.bf16.msra.mxu0 %v2338
  %3100 = vmatprep.mubr.bf16.mxu0 %v2607
  %3101 = vmatmul.mubr.bf16.gmra.mxu0 %v2606
  %v3102 = vpop.f32.mrf.mxu0
  %v3103 = vadd.f32 %v3006, %v3102
  %v3104 = vpop.f32.mrf.mxu0
  %v3105 = vpop.f32.mrf.mxu0
  %v3106 = vadd.f32 %v3009, %v3105
  %v3107 = vpop.f32.mrf.mxu0
  %3108 = vmatprep.mubr.bf16.mxu0 %v2617
  %3109 = vmatmul.mubr.bf16.gmra.mxu0 %v2616
  %v3110 = vpop.f32.mrf.mxu0
  %v3111 = vadd.f32 %v3014, %v3110
  %v3112 = vpop.f32.mrf.mxu0
  %v3113 = vpop.f32.mrf.mxu0
  %v3114 = vadd.f32 %v3017, %v3113
  %v3115 = vpop.f32.mrf.mxu0
  %3116 = vmatprep.mubr.bf16.mxu0 %v2627
  %3117 = vmatmul.mubr.bf16.gmra.mxu0 %v2626
  %v3118 = vpop.f32.mrf.mxu0
  %v3119 = vadd.f32 %v3022, %v3118
  %v3120 = vpop.f32.mrf.mxu0
  %v3121 = vpop.f32.mrf.mxu0
  %v3122 = vadd.f32 %v3025, %v3121
  %v3123 = vpop.f32.mrf.mxu0
  %3124 = vmatprep.mubr.bf16.mxu0 %v2637
  %3125 = vmatmul.mubr.bf16.gmra.mxu0 %v2636
  %v3126 = vpop.f32.mrf.mxu0
  %v3127 = vadd.f32 %v3030, %v3126
  %v3128 = vpop.f32.mrf.mxu0
  %v3129 = vpop.f32.mrf.mxu0
  %v3130 = vadd.f32 %v3033, %v3129
  %v3131 = vpop.f32.mrf.mxu0
  %3132 = vmatprep.mubr.bf16.mxu0 %v2647
  %3133 = vmatmul.mubr.bf16.gmra.mxu0 %v2646
  %v3134 = vpop.f32.mrf.mxu0
  %v3135 = vadd.f32 %v3038, %v3134
  %v3136 = vpop.f32.mrf.mxu0
  %v3137 = vpop.f32.mrf.mxu0
  %v3138 = vadd.f32 %v3041, %v3137
  %v3139 = vpop.f32.mrf.mxu0
  %3140 = vmatprep.mubr.bf16.mxu0 %v2657
  %3141 = vmatmul.mubr.bf16.gmra.mxu0 %v2656
  %v3142 = vpop.f32.mrf.mxu0
  %v3143 = vadd.f32 %v3046, %v3142
  %v3144 = vpop.f32.mrf.mxu0
  %v3145 = vpop.f32.mrf.mxu0
  %v3146 = vadd.f32 %v3049, %v3145
  %v3147 = vpop.f32.mrf.mxu0
  %3148 = vmatprep.mubr.bf16.mxu0 %v2667
  %3149 = vmatmul.mubr.bf16.gmra.mxu0 %v2666
  %v3150 = vpop.f32.mrf.mxu0
  %v3151 = vadd.f32 %v3054, %v3150
  %v3152 = vpop.f32.mrf.mxu0
  %v3153 = vpop.f32.mrf.mxu0
  %v3154 = vadd.f32 %v3057, %v3153
  %v3155 = vpop.f32.mrf.mxu0
  %3156 = vmatprep.mubr.bf16.mxu0 %v2677
  %3157 = vmatmul.mubr.bf16.gmra.mxu0 %v2676
  %v3158 = vpop.f32.mrf.mxu0
  %v3159 = vadd.f32 %v3062, %v3158
  %v3160 = vpop.f32.mrf.mxu0
  %v3161 = vpop.f32.mrf.mxu0
  %v3162 = vadd.f32 %v3065, %v3161
  %v3163 = vpop.f32.mrf.mxu0
  %3164 = vdwg.mxu0
  %3165 = vmatprep.subr.bf16.mxu0 0
  %3166 = vmatpush1.bf16.msra.mxu0 %v2353
  %3167 = vmatprep.subr.bf16.mxu0 0
  %3168 = vmatpush1.bf16.msra.mxu0 %v2352
  %3169 = vmatprep.subr.bf16.mxu0 0
  %3170 = vmatpush1.bf16.msra.mxu0 %v2351
  %3171 = vmatprep.subr.bf16.mxu0 0
  %3172 = vmatpush1.bf16.msra.mxu0 %v2350
  %3173 = vmatprep.subr.bf16.mxu0 0
  %3174 = vmatpush1.bf16.msra.mxu0 %v2349
  %3175 = vmatprep.subr.bf16.mxu0 0
  %3176 = vmatpush1.bf16.msra.mxu0 %v2348
  %3177 = vmatprep.subr.bf16.mxu0 0
  %3178 = vmatpush1.bf16.msra.mxu0 %v2347
  %3179 = vmatprep.subr.bf16.mxu0 0
  %3180 = vmatpush1.bf16.msra.mxu0 %v2346
  %3181 = vmatprep.subr.bf16.mxu0 0
  %3182 = vmatpush2.bf16.msra.mxu0 0
  %3183 = vmatprep.subr.bf16.mxu0 0
  %3184 = vmatpush2.bf16.msra.mxu0 0
  %3185 = vmatprep.subr.bf16.mxu0 0
  %3186 = vmatpush2.bf16.msra.mxu0 %v2359
  %3187 = vmatprep.subr.bf16.mxu0 0
  %3188 = vmatpush2.bf16.msra.mxu0 %v2358
  %3189 = vmatprep.subr.bf16.mxu0 0
  %3190 = vmatpush2.bf16.msra.mxu0 %v2357
  %3191 = vmatprep.subr.bf16.mxu0 0
  %3192 = vmatpush2.bf16.msra.mxu0 %v2356
  %3193 = vmatprep.subr.bf16.mxu0 0
  %3194 = vmatpush2.bf16.msra.mxu0 %v2355
  %3195 = vmatprep.subr.bf16.mxu0 0
  %3196 = vmatpush2.bf16.msra.mxu0 %v2354
  %3197 = vmatprep.mubr.bf16.mxu0 %v2754
  %3198 = vmatmul.mubr.bf16.gmra.mxu0 %v2608
  %v3199 = vpop.f32.mrf.mxu0
  %v3200 = vadd.f32 %v3103, %v3199
  %v3201 = vpop.f32.mrf.mxu0
  %v3202 = vpop.f32.mrf.mxu0
  %v3203 = vadd.f32 %v3106, %v3202
  %v3204 = vpop.f32.mrf.mxu0
  %3205 = vmatprep.mubr.bf16.mxu0 %v2757
  %3206 = vmatmul.mubr.bf16.gmra.mxu0 %v2618
  %v3207 = vpop.f32.mrf.mxu0
  %v3208 = vadd.f32 %v3111, %v3207
  %v3209 = vpop.f32.mrf.mxu0
  %v3210 = vpop.f32.mrf.mxu0
  %v3211 = vadd.f32 %v3114, %v3210
  %v3212 = vpop.f32.mrf.mxu0
  %3213 = vmatprep.mubr.bf16.mxu0 %v2760
  %3214 = vmatmul.mubr.bf16.gmra.mxu0 %v2628
  %v3215 = vpop.f32.mrf.mxu0
  %v3216 = vadd.f32 %v3119, %v3215
  %v3217 = vpop.f32.mrf.mxu0
  %v3218 = vpop.f32.mrf.mxu0
  %v3219 = vadd.f32 %v3122, %v3218
  %v3220 = vpop.f32.mrf.mxu0
  %3221 = vmatprep.mubr.bf16.mxu0 %v2763
  %3222 = vmatmul.mubr.bf16.gmra.mxu0 %v2638
  %v3223 = vpop.f32.mrf.mxu0
  %v3224 = vadd.f32 %v3127, %v3223
  %v3225 = vpop.f32.mrf.mxu0
  %v3226 = vpop.f32.mrf.mxu0
  %v3227 = vadd.f32 %v3130, %v3226
  %v3228 = vpop.f32.mrf.mxu0
  %3229 = vmatprep.mubr.bf16.mxu0 %v2766
  %3230 = vmatmul.mubr.bf16.gmra.mxu0 %v2648
  %v3231 = vpop.f32.mrf.mxu0
  %v3232 = vadd.f32 %v3135, %v3231
  %v3233 = vpop.f32.mrf.mxu0
  %v3234 = vpop.f32.mrf.mxu0
  %v3235 = vadd.f32 %v3138, %v3234
  %v3236 = vpop.f32.mrf.mxu0
  %3237 = vmatprep.mubr.bf16.mxu0 %v2769
  %3238 = vmatmul.mubr.bf16.gmra.mxu0 %v2658
  %v3239 = vpop.f32.mrf.mxu0
  %v3240 = vadd.f32 %v3143, %v3239
  %v3241 = vpop.f32.mrf.mxu0
  %v3242 = vpop.f32.mrf.mxu0
  %v3243 = vadd.f32 %v3146, %v3242
  %v3244 = vpop.f32.mrf.mxu0
  %3245 = vmatprep.mubr.bf16.mxu0 %v2772
  %3246 = vmatmul.mubr.bf16.gmra.mxu0 %v2668
  %v3247 = vpop.f32.mrf.mxu0
  %v3248 = vadd.f32 %v3151, %v3247
  %v3249 = vpop.f32.mrf.mxu0
  %v3250 = vpop.f32.mrf.mxu0
  %v3251 = vadd.f32 %v3154, %v3250
  %v3252 = vpop.f32.mrf.mxu0
  %3253 = vmatprep.mubr.bf16.mxu0 %v2775
  %3254 = vmatmul.mubr.bf16.gmra.mxu0 %v2678
  %v3255 = vpop.f32.mrf.mxu0
  %v3256 = vadd.f32 %v3159, %v3255
  %v3257 = vpop.f32.mrf.mxu0
  %v3258 = vpop.f32.mrf.mxu0
  %v3259 = vadd.f32 %v3162, %v3258
  %v3260 = vpop.f32.mrf.mxu0
  %3261 = vdwg.mxu0
  %v3262 = vld [vmem:[%s3] sm:$0xff]
  %v3263 = vld [vmem:[%s3 + $0x8] sm:$0xff]
  %v3264 = vld [vmem:[%s3 + $0x10] sm:$0xff]
  %v3265 = vld [vmem:[%s3 + $0x18] sm:$0xff]
  %v3266 = vld [vmem:[%s3 + $0x20] sm:$0xff]
  %v3267 = vld [vmem:[%s3 + $0x28] sm:$0xff]
  %v3268 = vld [vmem:[%s3 + $0x30] sm:$0xff]
  %v3269 = vld [vmem:[%s3 + $0x38] sm:$0xff]
  %v3270 = vld [vmem:[%s3 + $0x40] sm:$0xff]
  %v3271 = vld [vmem:[%s3 + $0x48] sm:$0xff]
  %v3272 = vld [vmem:[%s3 + $0x50] sm:$0xff]
  %v3273 = vld [vmem:[%s3 + $0x58] sm:$0xff]
  %v3274 = vld [vmem:[%s3 + $0x60] sm:$0xff]
  %v3275 = vld [vmem:[%s3 + $0x68] sm:$0xff]
  %v3276 = vld [vmem:[%s3 + $0x70] sm:$0xff]
  %v3277 = vld [vmem:[%s3 + $0x78] sm:$0xff]
  %3279 = vset.pattern.permute.xlu0 0
  %3280 = vperm.xlu0 %3279, %v3262
  %v3281 = vpop.permute.xlu0 %3280
  %3284 = vset.pattern.permute.xlu0 0
  %3285 = vperm.xlu0 %3284, %v3263
  %v3286 = vpop.permute.xlu0 %3285
  %3289 = vset.pattern.permute.xlu0 0
  %3290 = vperm.xlu0 %3289, %v3264
  %v3291 = vpop.permute.xlu0 %3290
  %3294 = vset.pattern.permute.xlu0 0
  %3295 = vperm.xlu0 %3294, %v3265
  %v3296 = vpop.permute.xlu0 %3295
  %3299 = vset.pattern.permute.xlu0 0
  %3300 = vperm.xlu0 %3299, %v3266
  %v3301 = vpop.permute.xlu0 %3300
  %3304 = vset.pattern.permute.xlu0 0
  %3305 = vperm.xlu0 %3304, %v3267
  %v3306 = vpop.permute.xlu0 %3305
  %3309 = vset.pattern.permute.xlu0 0
  %3310 = vperm.xlu0 %3309, %v3268
  %v3311 = vpop.permute.xlu0 %3310
  %3314 = vset.pattern.permute.xlu0 0
  %3315 = vperm.xlu0 %3314, %v3269
  %v3316 = vpop.permute.xlu0 %3315
  %3319 = vset.pattern.permute.xlu0 0
  %3320 = vperm.xlu0 %3319, %v3270
  %v3321 = vpop.permute.xlu0 %3320
  %3324 = vset.pattern.permute.xlu0 0
  %3325 = vperm.xlu0 %3324, %v3271
  %v3326 = vpop.permute.xlu0 %3325
  %3329 = vset.pattern.permute.xlu0 0
  %3330 = vperm.xlu0 %3329, %v3272
  %v3331 = vpop.permute.xlu0 %3330
  %3334 = vset.pattern.permute.xlu0 0
  %3335 = vperm.xlu0 %3334, %v3273
  %v3336 = vpop.permute.xlu0 %3335
  %3339 = vset.pattern.permute.xlu0 0
  %3340 = vperm.xlu0 %3339, %v3274
  %v3341 = vpop.permute.xlu0 %3340
  %3344 = vset.pattern.permute.xlu0 0
  %3345 = vperm.xlu0 %3344, %v3275
  %v3346 = vpop.permute.xlu0 %3345
  %3349 = vset.pattern.permute.xlu0 0
  %3350 = vperm.xlu0 %3349, %v3276
  %v3351 = vpop.permute.xlu0 %3350
  %3354 = vset.pattern.permute.xlu0 0
  %3355 = vperm.xlu0 %3354, %v3277
  %v3356 = vpop.permute.xlu0 %3355
  %v3358 = vmul.f32 %v3200, %v3281
  %v3359 = vmul.f32 %v3203, %v3286
  %v3360 = vmul.f32 %v3208, %v3291
  %v3361 = vmul.f32 %v3211, %v3296
  %v3362 = vmul.f32 %v3216, %v3301
  %v3363 = vmul.f32 %v3219, %v3306
  %v3364 = vmul.f32 %v3224, %v3311
  %v3365 = vmul.f32 %v3227, %v3316
  %v3366 = vmul.f32 %v3232, %v3321
  %v3367 = vmul.f32 %v3235, %v3326
  %v3368 = vmul.f32 %v3240, %v3331
  %v3369 = vmul.f32 %v3243, %v3336
  %v3370 = vmul.f32 %v3248, %v3341
  %v3371 = vmul.f32 %v3251, %v3346
  %v3372 = vmul.f32 %v3256, %v3351
  %v3373 = vmul.f32 %v3259, %v3356
  %3374 = vset.pattern.permute.xlu0 1
  %3375 = vperm.xlu0 %3374, %v3262
  %v3376 = vpop.permute.xlu0 %3375
  %3378 = vset.pattern.permute.xlu0 1
  %3379 = vperm.xlu0 %3378, %v3263
  %v3380 = vpop.permute.xlu0 %3379
  %3382 = vset.pattern.permute.xlu0 1
  %3383 = vperm.xlu0 %3382, %v3264
  %v3384 = vpop.permute.xlu0 %3383
  %3386 = vset.pattern.permute.xlu0 1
  %3387 = vperm.xlu0 %3386, %v3265
  %v3388 = vpop.permute.xlu0 %3387
  %3390 = vset.pattern.permute.xlu0 1
  %3391 = vperm.xlu0 %3390, %v3266
  %v3392 = vpop.permute.xlu0 %3391
  %3394 = vset.pattern.permute.xlu0 1
  %3395 = vperm.xlu0 %3394, %v3267
  %v3396 = vpop.permute.xlu0 %3395
  %3398 = vset.pattern.permute.xlu0 1
  %3399 = vperm.xlu0 %3398, %v3268
  %v3400 = vpop.permute.xlu0 %3399
  %3402 = vset.pattern.permute.xlu0 1
  %3403 = vperm.xlu0 %3402, %v3269
  %v3404 = vpop.permute.xlu0 %3403
  %3406 = vset.pattern.permute.xlu0 1
  %3407 = vperm.xlu0 %3406, %v3270
  %v3408 = vpop.permute.xlu0 %3407
  %3410 = vset.pattern.permute.xlu0 1
  %3411 = vperm.xlu0 %3410, %v3271
  %v3412 = vpop.permute.xlu0 %3411
  %3414 = vset.pattern.permute.xlu0 1
  %3415 = vperm.xlu0 %3414, %v3272
  %v3416 = vpop.permute.xlu0 %3415
  %3418 = vset.pattern.permute.xlu0 1
  %3419 = vperm.xlu0 %3418, %v3273
  %v3420 = vpop.permute.xlu0 %3419
  %3422 = vset.pattern.permute.xlu0 1
  %3423 = vperm.xlu0 %3422, %v3274
  %v3424 = vpop.permute.xlu0 %3423
  %3426 = vset.pattern.permute.xlu0 1
  %3427 = vperm.xlu0 %3426, %v3275
  %v3428 = vpop.permute.xlu0 %3427
  %3430 = vset.pattern.permute.xlu0 1
  %3431 = vperm.xlu0 %3430, %v3276
  %v3432 = vpop.permute.xlu0 %3431
  %3434 = vset.pattern.permute.xlu0 1
  %3435 = vperm.xlu0 %3434, %v3277
  %v3436 = vpop.permute.xlu0 %3435
  %v3438 = vadd.f32 %v3358, %v3376
  %v3439 = vadd.f32 %v3359, %v3380
  %v3440 = vadd.f32 %v3360, %v3384
  %v3441 = vadd.f32 %v3361, %v3388
  %v3442 = vadd.f32 %v3362, %v3392
  %v3443 = vadd.f32 %v3363, %v3396
  %v3444 = vadd.f32 %v3364, %v3400
  %v3445 = vadd.f32 %v3365, %v3404
  %v3446 = vadd.f32 %v3366, %v3408
  %v3447 = vadd.f32 %v3367, %v3412
  %v3448 = vadd.f32 %v3368, %v3416
  %v3449 = vadd.f32 %v3369, %v3420
  %v3450 = vadd.f32 %v3370, %v3424
  %v3451 = vadd.f32 %v3371, %v3428
  %v3452 = vadd.f32 %v3372, %v3432
  %v3453 = vadd.f32 %v3373, %v3436
  %v3454 = vmax.f32 %v3438, 0.0
  %v3455 = vmax.f32 %v3439, 0.0
  %v3456 = vmax.f32 %v3440, 0.0
  %v3457 = vmax.f32 %v3441, 0.0
  %v3458 = vmax.f32 %v3442, 0.0
  %v3459 = vmax.f32 %v3443, 0.0
  %v3460 = vmax.f32 %v3444, 0.0
  %v3461 = vmax.f32 %v3445, 0.0
  %v3462 = vmax.f32 %v3446, 0.0
  %v3463 = vmax.f32 %v3447, 0.0
  %v3464 = vmax.f32 %v3448, 0.0
  %v3465 = vmax.f32 %v3449, 0.0
  %v3466 = vmax.f32 %v3450, 0.0
  %v3467 = vmax.f32 %v3451, 0.0
  %v3468 = vmax.f32 %v3452, 0.0
  %v3469 = vmax.f32 %v3453, 0.0
  %vm3470 = vcmask 400384
  %3471 = vst.msk [vmem:[%s4] sm:$0xff] %vm3470, %v3454
  %3472 = vst.msk [vmem:[%s4 + $0x8] sm:$0xff] %vm3470, %v3455
  %3473 = vst.msk [vmem:[%s4 + $0x10] sm:$0xff] %vm3470, %v3456
  %3474 = vst.msk [vmem:[%s4 + $0x18] sm:$0xff] %vm3470, %v3457
  %3475 = vst.msk [vmem:[%s4 + $0x20] sm:$0xff] %vm3470, %v3458
  %3476 = vst.msk [vmem:[%s4 + $0x28] sm:$0xff] %vm3470, %v3459
  %3477 = vst.msk [vmem:[%s4 + $0x30] sm:$0xff] %vm3470, %v3460
  %3478 = vst.msk [vmem:[%s4 + $0x38] sm:$0xff] %vm3470, %v3461
  %3479 = vst.msk [vmem:[%s4 + $0x40] sm:$0xff] %vm3470, %v3462
  %3480 = vst.msk [vmem:[%s4 + $0x48] sm:$0xff] %vm3470, %v3463
  %3481 = vst.msk [vmem:[%s4 + $0x50] sm:$0xff] %vm3470, %v3464
  %3482 = vst.msk [vmem:[%s4 + $0x58] sm:$0xff] %vm3470, %v3465
  %3483 = vst.msk [vmem:[%s4 + $0x60] sm:$0xff] %vm3470, %v3466
  %3484 = vst.msk [vmem:[%s4 + $0x68] sm:$0xff] %vm3470, %v3467
  %3485 = vst.msk [vmem:[%s4 + $0x70] sm:$0xff] %vm3470, %v3468
  %3486 = vst.msk [vmem:[%s4 + $0x78] sm:$0xff] %vm3470, %v3469
  // Predicated region
  $region18: #{fused_forward.1} parent=0 // pred_check
    _
  $region19: #{fused_forward.1} parent=0 // pred_check_branch
    %3488 = sbr.rel (0) target = $region21
  $region20: #{fused_forward.1} parent=0 // pred_region
    _
  $region21: #{fused_forward.1} parent=0 // pred_fallthru
    _
  // Predicated region
  $region22: #{fused_forward.1} parent=0 // pred_check
    _
  $region23: #{fused_forward.1} parent=0 // pred_check_branch
    %3490 = sbr.rel (0) target = $region25
  $region24: #{fused_forward.1} parent=0 // pred_region
    _
  $region25: #{fused_forward.1} parent=0 // pred_fallthru
    _

</llo_original>
